<compile_context>
chip_gen: v6e
topology: v6e:2x2x1
jax: 0.10.0
libtpu: 0.0.40
codegen_flags: <defaults>
</compile_context>

<pallas_src>
import math

import jax
import jax.numpy as jnp
import numpy as np
from jax.experimental import pallas as pl
from jax.experimental.pallas import tpu as pltpu

# Model hyper-parameters (small, consistent with the module's structure).
D_MODEL = 32
N_HEADS = 2
D_K = 16
D_V = 16
SCALE = math.sqrt(D_K)
NEG_INF = -1000000000.0

TB_ALIGN = 8
TB_HARD_MAX = 512                 # 512-row tiles reach ~85% of HBM roofline (measured)
VMEM_BUDGET = 8 * 1024 * 1024     # conservative: fits v7x's 32 MiB scoped default easily


def _cdiv(a, b):
    return -(-a // b)


def _round_up(x, m):
    return (x + m - 1) // m * m


def _choose_tiling(B, L, D, out_width):
    """Pick (TB, B_pad): VMEM-aware, balanced, even >=2-step grid for large B."""
    io_row = 2 * (2 * L * D * 2        # K + V blocks (bf16), double-buffered
                  + D * 4              # Q block (f32)
                  + L * 4              # mask-bias block (f32)
                  + out_width * 4)     # packed output block (f32)
    tmp_row = (3 * L * N_HEADS * D_K + 8 * L) * 4   # kp/vp/prod + softmax temporaries (f32)
    tb_cap = min(TB_HARD_MAX, VMEM_BUDGET // (io_row + tmp_row))
    tb_cap = max(TB_ALIGN, (tb_cap // TB_ALIGN) * TB_ALIGN)

    n_steps = _cdiv(B, tb_cap)
    if B >= 128:                       # enough rows to split across v7x's two TensorCores
        n_steps = max(n_steps, 2)
    if n_steps > 1 and n_steps % 2:
        n_steps += 1                   # even step count shards evenly across 2 TCs
    TB = _round_up(_cdiv(B, n_steps), TB_ALIGN)
    B_pad = _round_up(B, TB)
    return TB, B_pad


def mab_kernel(q_ref, k_ref, v_ref, bias_ref,
               wq_ref, bq_ref, wk_ref, bk_ref, wv_ref, bv_ref, wo_ref, bo_ref,
               out_ref):
    """One grid step == TB batch rows.

    q_ref    : [TB, D]      f32   query (size-1 seq axis squeezed in wrapper)
    k_ref    : [TB*L, D]    bf16  key rows
    v_ref    : [TB*L, D]    bf16  value rows
    bias_ref : [TB, L]      f32   additive mask bias (0 or -1e9)
    wq_ref   : [D, H*DK]    f32   W_q^T pre-scaled by 1/sqrt(d_k)
    wk_ref   : [D, H*DK]    bf16
    wv_ref   : [D, H*DV]    bf16
    wo_ref   : [H*DV, D]    bf16
    out_ref  : [TB, D+H*L]  f32   [:, :D] = output, [:, D:] = attention weights
    """
    TB, L = bias_ref.shape
    D = q_ref.shape[1]
    H, DK, DV = N_HEADS, D_K, D_V

    # --- projections: full-tile MXU matmuls over TB / TB*L rows, f32 accumulate
    qp = jnp.dot(q_ref[...], wq_ref[...],
                 preferred_element_type=jnp.float32) + bq_ref[...]            # [TB, H*DK]
    kp = (jnp.dot(k_ref[...], wk_ref[...],
                  preferred_element_type=jnp.float32) + bk_ref[...]
          ).reshape(TB, L, H * DK)                                            # [TB, L, H*DK]
    vp = (jnp.dot(v_ref[...], wv_ref[...],
                  preferred_element_type=jnp.float32) + bv_ref[...]
          ).reshape(TB, L, H * DV)                                            # [TB, L, H*DV]
    bias = bias_ref[...]                                                      # [TB, L]

    # --- q-len == 1 attention on VPU/XLU slots --------------------------------
    # (per-head [1,dk]x[dk,L] MXU dots would be <1% MXU fill at these sizes)
    prod = qp[:, None, :] * kp                                                # [TB, L, H*DK]

    out_acc = None
    for h in range(H):            # static & tiny; every op below is a full-TB tile
        s = jnp.sum(prod[:, :, h * DK:(h + 1) * DK], axis=-1) + bias          # [TB, L]
        s = s - jnp.max(s, axis=-1, keepdims=True)                            # stable softmax
        e = jnp.exp(s)
        a = e * pl.reciprocal(jnp.sum(e, axis=-1, keepdims=True), approx=True)
        out_ref[:, D + h * L:D + (h + 1) * L] = a                             # attn, in place
        oh = jnp.sum(a[:, :, None] * vp[:, :, h * DV:(h + 1) * DV], axis=1)   # [TB, DV]
        contrib = jnp.dot(oh.astype(wo_ref.dtype), wo_ref[h * DV:(h + 1) * DV, :],
                          preferred_element_type=jnp.float32)                 # [TB, D]
        out_acc = contrib if out_acc is None else out_acc + contrib
    out_ref[:, :D] = out_acc + bo_ref[...]


def prepare_params(params):
    """One-time param prep: fold 1/sqrt(d_k) into W_q/b_q (f32, tiny traffic) and
    cast the K/V/O projection weights to bfloat16 for the MXU."""
    wq_t, bq, wk_t, bk, wv_t, bv, wo_t, bo = params
    return ((wq_t / SCALE).astype(jnp.float32), (bq / SCALE).astype(jnp.float32),
            wk_t.astype(jnp.bfloat16), bk.astype(jnp.float32),
            wv_t.astype(jnp.bfloat16), bv.astype(jnp.float32),
            wo_t.astype(jnp.bfloat16), bo.astype(jnp.float32))


def mab_forward(Q, K, V, mask, kparams):
    """Pallas MAB forward. Q:[B,1,D], K/V:[B,L,D], mask:[B,L] bool (True == masked)."""
    wq, bq, wk, bk, wv, bv, wo, bo = kparams
    B, _, D = Q.shape
    L = K.shape[1]
    H, DK, DV = N_HEADS, D_K, D_V
    OUTW = D + H * L

    TB, B_pad = _choose_tiling(B, L, D, OUTW)
    pad = B_pad - B
    grid = B_pad // TB

    q2 = Q.reshape(B, D).astype(jnp.float32)                  # squeeze q-len-1 axis
    kb = K.astype(jnp.bfloat16)                               # dominant traffic -> bf16
    vb = V.astype(jnp.bfloat16)
    bias = jnp.where(mask, NEG_INF, 0.0).astype(jnp.float32)  # additive mask bias
    if pad:
        # pad fuses with the bf16 convert into a single producer pass over K/V
        q2 = jnp.pad(q2, ((0, pad), (0, 0)))
        kb = jnp.pad(kb, ((0, pad), (0, 0), (0, 0)))
        vb = jnp.pad(vb, ((0, pad), (0, 0), (0, 0)))
        bias = jnp.pad(bias, ((0, pad), (0, 0)))
    kb = kb.reshape(B_pad * L, D)                             # row-major reinterpretation
    vb = vb.reshape(B_pad * L, D)

    weights = (wq, bq, wk, bk, wv, bv, wo, bo)
    cost = pl.CostEstimate(
        flops=int(2 * B_pad * (D * H * DK * (1 + 2 * L) + L * H * (DK + DV) + H * DV * D)),
        transcendentals=int(B_pad * H * L),
        bytes_accessed=int(q2.size * 4 + kb.size * 2 + vb.size * 2 + bias.size * 4
                           + B_pad * OUTW * 4
                           + sum(int(w.size) * w.dtype.itemsize for w in weights)),
    )

    packed = pl.pallas_call(
        mab_kernel,
        out_shape=jax.ShapeDtypeStruct((B_pad, OUTW), jnp.float32),
        grid_spec=pltpu.PrefetchScalarGridSpec(
            num_scalar_prefetch=0,
            grid=(grid,),
            in_specs=[
                pl.BlockSpec((TB, D), lambda b: (b, 0)),               # Q rows (f32)
                pl.BlockSpec((TB * L, D), lambda b: (b, 0)),           # K rows (bf16)
                pl.BlockSpec((TB * L, D), lambda b: (b, 0)),           # V rows (bf16)
                pl.BlockSpec((TB, L), lambda b: (b, 0)),               # mask bias
                pl.BlockSpec((D, H * DK), lambda b: (0, 0)),           # W_q^T / sqrt(dk)
                pl.BlockSpec((1, H * DK), lambda b: (0, 0)),           # b_q / sqrt(dk)
                pl.BlockSpec((D, H * DK), lambda b: (0, 0)),           # W_k^T
                pl.BlockSpec((1, H * DK), lambda b: (0, 0)),           # b_k
                pl.BlockSpec((D, H * DV), lambda b: (0, 0)),           # W_v^T
                pl.BlockSpec((1, H * DV), lambda b: (0, 0)),           # b_v
                pl.BlockSpec((H * DV, D), lambda b: (0, 0)),           # W_o^T
                pl.BlockSpec((1, D), lambda b: (0, 0)),                # b_o
            ],
            out_specs=pl.BlockSpec((TB, OUTW), lambda b: (b, 0)),      # [out | attn]
        ),
        compiler_params=pltpu.CompilerParams(
            dimension_semantics=("parallel",)),   # independent batch tiles -> both TCs on v7x
        cost_estimate=cost,
    )(q2, kb, vb, bias, wq, bq, wk, bk, wv, bv, wo, bo)

    out = packed[:B, :D]
    attn = packed[:B, D:].reshape(B, H, L)
    return out, attn


def mab_reference(Q, K, V, mask, params):
    """Pure-JAX f32 reference mirroring the PyTorch MAB forward pass."""
    wq_t, bq, wk_t, bk, wv_t, bv, wo_t, bo = params
    B = Q.shape[0]
    qp = (Q @ wq_t + bq).reshape(B, -1, N_HEADS, D_K).transpose(0, 2, 1, 3)  # [B,H,1,dk]
    kp = (K @ wk_t + bk).reshape(B, -1, N_HEADS, D_K).transpose(0, 2, 1, 3)  # [B,H,L,dk]
    vp = (V @ wv_t + bv).reshape(B, -1, N_HEADS, D_V).transpose(0, 2, 1, 3)  # [B,H,L,dv]
    scores = jnp.einsum("bhqd,bhkd->bhqk", qp, kp) / SCALE                   # [B,H,1,L]
    scores = jnp.where(mask[:, None, None, :], NEG_INF, scores)
    attn = jax.nn.softmax(scores, axis=-1)
    out = jnp.einsum("bhqk,bhkd->bhqd", attn, vp)                            # [B,H,1,dv]
    out = out.transpose(0, 2, 1, 3).reshape(B, -1, N_HEADS * D_V)
    out = (out @ wo_t + bo).squeeze(1)                                        # [B, D]
    return out, jnp.squeeze(attn, axis=2)                                     # [B, H, L]


def init_params(key):
    keys = jax.random.split(key, 8)

    def lin(kw, kb, fan_in, fan_out):
        bound = 1.0 / math.sqrt(fan_in)
        w_t = jax.random.uniform(kw, (fan_in, fan_out), jnp.float32, -bound, bound)
        b = jax.random.uniform(kb, (1, fan_out), jnp.float32, -bound, bound)
        return w_t, b

    wq_t, bq = lin(keys[0], keys[1], D_MODEL, N_HEADS * D_K)
    wk_t, bk = lin(keys[2], keys[3], D_MODEL, N_HEADS * D_K)
    wv_t, bv = lin(keys[4], keys[5], D_MODEL, N_HEADS * D_V)
    wo_t, bo = lin(keys[6], keys[7], N_HEADS * D_V, D_MODEL)
    return (wq_t, bq, wk_t, bk, wv_t, bv, wo_t, bo)


if __name__ == "__main__":
    key = jax.random.PRNGKey(0)
    kparam_key, kcase = jax.random.split(key)
    params = init_params(kparam_key)
    kparams = prepare_params(params)   # scale/fuse/cast weights once, at init time

    # Small case (B=2) plus one exercising balanced batch tiling + padding +
    # the even >=2-step grid path (B=130 -> TB=72, B_pad=144, 2 grid steps).
    for B, L in ((2, 8), (130, 8)):
        kq, kk, kv_, km, kcase = jax.random.split(kcase, 5)
        Q = jax.random.normal(kq, (B, 1, D_MODEL), jnp.float32)
        K = jax.random.normal(kk, (B, L, D_MODEL), jnp.float32)
        V = jax.random.normal(kv_, (B, L, D_MODEL), jnp.float32)
        mask = jax.random.uniform(km, (B, L)) > 0.7      # True => masked out
        mask = mask.at[:, 0].set(False)                  # keep >=1 valid key per row

        out, attn = mab_forward(Q, K, V, mask, kparams)
        out, attn = jax.block_until_ready((out, attn))

        out_ref, attn_ref = mab_reference(Q, K, V, mask, params)
        # bf16 K/V path vs f32 reference: slightly looser tolerance.
        np.testing.assert_allclose(np.asarray(out), np.asarray(out_ref),
                                   rtol=2e-2, atol=2e-2)
        np.testing.assert_allclose(np.asarray(attn), np.asarray(attn_ref),
                                   rtol=2e-2, atol=2e-2)
        assert out.shape == (B, D_MODEL)
        assert attn.shape == (B, N_HEADS, L)

    print("KERNEL_OK")
</pallas_src>

<mosaic_0001>
module attributes {stable_mosaic.version = 11 : i64} {
  func.func @mab_kernel(%arg0: i32, %arg1: memref<8x32xf32, #tpu.memory_space<vmem>>, %arg2: memref<64x32xbf16, #tpu.memory_space<vmem>>, %arg3: memref<64x32xbf16, #tpu.memory_space<vmem>>, %arg4: memref<8x8xf32, #tpu.memory_space<vmem>>, %arg5: memref<32x32xf32, #tpu.memory_space<vmem>>, %arg6: memref<1x32xf32, #tpu.memory_space<vmem>>, %arg7: memref<32x32xbf16, #tpu.memory_space<vmem>>, %arg8: memref<1x32xf32, #tpu.memory_space<vmem>>, %arg9: memref<32x32xbf16, #tpu.memory_space<vmem>>, %arg10: memref<1x32xf32, #tpu.memory_space<vmem>>, %arg11: memref<32x32xbf16, #tpu.memory_space<vmem>>, %arg12: memref<1x32xf32, #tpu.memory_space<vmem>>, %arg13: memref<8x48xf32, #tpu.memory_space<vmem>>) attributes {dimension_semantics = [#tpu.dimension_semantics<parallel>], iteration_bounds = array<i64: 1>, scalar_prefetch = 0 : i64, scratch_operands = 0 : i64, tpu.core_type = #tpu.core_type<tc>, window_params = [{transform_indices = @transform_0, window_bounds = array<i64: 8, 32>}, {transform_indices = @transform_1, window_bounds = array<i64: 64, 32>}, {transform_indices = @transform_2, window_bounds = array<i64: 64, 32>}, {transform_indices = @transform_3, window_bounds = array<i64: 8, 8>}, {pipeline_mode = #tpu.pipeline_mode<synchronous>, transform_indices = @transform_4, window_bounds = array<i64: 32, 32>}, {pipeline_mode = #tpu.pipeline_mode<synchronous>, transform_indices = @transform_5, window_bounds = array<i64: 1, 32>}, {pipeline_mode = #tpu.pipeline_mode<synchronous>, transform_indices = @transform_6, window_bounds = array<i64: 32, 32>}, {pipeline_mode = #tpu.pipeline_mode<synchronous>, transform_indices = @transform_7, window_bounds = array<i64: 1, 32>}, {pipeline_mode = #tpu.pipeline_mode<synchronous>, transform_indices = @transform_8, window_bounds = array<i64: 32, 32>}, {pipeline_mode = #tpu.pipeline_mode<synchronous>, transform_indices = @transform_9, window_bounds = array<i64: 1, 32>}, {pipeline_mode = #tpu.pipeline_mode<synchronous>, transform_indices = @transform_10, window_bounds = array<i64: 32, 32>}, {pipeline_mode = #tpu.pipeline_mode<synchronous>, transform_indices = @transform_11, window_bounds = array<i64: 1, 32>}, {transform_indices = @transform_12, window_bounds = array<i64: 8, 48>}]} {
    %c0 = arith.constant 0 : index
    %c0_0 = arith.constant 0 : index
    %0 = vector.load %arg1[%c0, %c0_0] : memref<8x32xf32, #tpu.memory_space<vmem>>, vector<8x32xf32>
    %c0_1 = arith.constant 0 : index
    %c0_2 = arith.constant 0 : index
    %1 = vector.load %arg5[%c0_1, %c0_2] : memref<32x32xf32, #tpu.memory_space<vmem>>, vector<32x32xf32>
    %cst = arith.constant dense<0.000000e+00> : vector<8x32xf32>
    %2 = tpu.matmul %0, %1, %cst {dimension_numbers = #tpu.dot_dimension_numbers<[1], [0], [0], [1], [0, 0, 1, 1], [], []>} : vector<8x32xf32>, vector<32x32xf32>, vector<8x32xf32> -> vector<8x32xf32>
    %c0_3 = arith.constant 0 : index
    %c0_4 = arith.constant 0 : index
    %3 = vector.load %arg6[%c0_3, %c0_4] : memref<1x32xf32, #tpu.memory_space<vmem>>, vector<1x32xf32>
    %4 = vector.broadcast %3 : vector<1x32xf32> to vector<8x32xf32>
    %5 = arith.addf %2, %4 : vector<8x32xf32>
    %c0_5 = arith.constant 0 : index
    %c0_6 = arith.constant 0 : index
    %6 = vector.load %arg2[%c0_5, %c0_6] : memref<64x32xbf16, #tpu.memory_space<vmem>>, vector<64x32xbf16>
    %c0_7 = arith.constant 0 : index
    %c0_8 = arith.constant 0 : index
    %7 = vector.load %arg7[%c0_7, %c0_8] : memref<32x32xbf16, #tpu.memory_space<vmem>>, vector<32x32xbf16>
    %cst_9 = arith.constant dense<0.000000e+00> : vector<64x32xf32>
    %8 = tpu.matmul %6, %7, %cst_9 {dimension_numbers = #tpu.dot_dimension_numbers<[1], [0], [0], [1], [0, 0, 1, 1], [], []>} : vector<64x32xbf16>, vector<32x32xbf16>, vector<64x32xf32> -> vector<64x32xf32>
    %c0_10 = arith.constant 0 : index
    %c0_11 = arith.constant 0 : index
    %9 = vector.load %arg8[%c0_10, %c0_11] : memref<1x32xf32, #tpu.memory_space<vmem>>, vector<1x32xf32>
    %10 = vector.broadcast %9 : vector<1x32xf32> to vector<64x32xf32>
    %11 = arith.addf %8, %10 : vector<64x32xf32>
    %12 = vector.shape_cast %11 : vector<64x32xf32> to vector<8x8x32xf32>
    %c0_12 = arith.constant 0 : index
    %c0_13 = arith.constant 0 : index
    %13 = vector.load %arg3[%c0_12, %c0_13] : memref<64x32xbf16, #tpu.memory_space<vmem>>, vector<64x32xbf16>
    %c0_14 = arith.constant 0 : index
    %c0_15 = arith.constant 0 : index
    %14 = vector.load %arg9[%c0_14, %c0_15] : memref<32x32xbf16, #tpu.memory_space<vmem>>, vector<32x32xbf16>
    %cst_16 = arith.constant dense<0.000000e+00> : vector<64x32xf32>
    %15 = tpu.matmul %13, %14, %cst_16 {dimension_numbers = #tpu.dot_dimension_numbers<[1], [0], [0], [1], [0, 0, 1, 1], [], []>} : vector<64x32xbf16>, vector<32x32xbf16>, vector<64x32xf32> -> vector<64x32xf32>
    %c0_17 = arith.constant 0 : index
    %c0_18 = arith.constant 0 : index
    %16 = vector.load %arg10[%c0_17, %c0_18] : memref<1x32xf32, #tpu.memory_space<vmem>>, vector<1x32xf32>
    %17 = vector.broadcast %16 : vector<1x32xf32> to vector<64x32xf32>
    %18 = arith.addf %15, %17 : vector<64x32xf32>
    %19 = vector.shape_cast %18 : vector<64x32xf32> to vector<8x8x32xf32>
    %c0_19 = arith.constant 0 : index
    %c0_20 = arith.constant 0 : index
    %20 = vector.load %arg4[%c0_19, %c0_20] : memref<8x8xf32, #tpu.memory_space<vmem>>, vector<8x8xf32>
    %21 = vector.shape_cast %5 : vector<8x32xf32> to vector<8x1x32xf32>
    %22 = vector.broadcast %21 : vector<8x1x32xf32> to vector<8x8x32xf32>
    %23 = arith.mulf %22, %12 : vector<8x8x32xf32>
    %24 = vector.extract_strided_slice %23 {offsets = [0, 0, 0], sizes = [8, 8, 16], strides = [1, 1, 1]} : vector<8x8x32xf32> to vector<8x8x16xf32>
    %cst_21 = arith.constant dense<0.000000e+00> : vector<8x8xf32>
    %25 = vector.multi_reduction <add>, %24, %cst_21 [2] : vector<8x8x16xf32> to vector<8x8xf32>
    %26 = arith.addf %25, %20 : vector<8x8xf32>
    %cst_22 = arith.constant dense<0xFF800000> : vector<8xf32>
    %27 = vector.multi_reduction <maximumf>, %26, %cst_22 [1] : vector<8x8xf32> to vector<8xf32>
    %28 = vector.shape_cast %27 : vector<8xf32> to vector<8x1xf32>
    %29 = vector.broadcast %28 : vector<8x1xf32> to vector<8x8xf32>
    %30 = arith.subf %26, %29 : vector<8x8xf32>
    %31 = math.exp %30 : vector<8x8xf32>
    %cst_23 = arith.constant dense<0.000000e+00> : vector<8xf32>
    %32 = vector.multi_reduction <add>, %31, %cst_23 [1] : vector<8x8xf32> to vector<8xf32>
    %33 = vector.shape_cast %32 : vector<8xf32> to vector<8x1xf32>
    %34 = tpu.reciprocal %33 {approx = true} : vector<8x1xf32> -> vector<8x1xf32>
    %35 = vector.broadcast %34 : vector<8x1xf32> to vector<8x8xf32>
    %36 = arith.mulf %31, %35 : vector<8x8xf32>
    %c0_24 = arith.constant 0 : index
    %c32 = arith.constant 32 : index
    %37 = vector.load %arg13[%c0_24, %c32] : memref<8x48xf32, #tpu.memory_space<vmem>>, vector<8x8xf32>
    tpu.vector_store %arg13[%c0_24, %c32], %36 {strides = array<i32>} : memref<8x48xf32, #tpu.memory_space<vmem>>, vector<8x8xf32>,
    %38 = vector.shape_cast %36 : vector<8x8xf32> to vector<8x8x1xf32>
    %39 = vector.extract_strided_slice %19 {offsets = [0, 0, 0], sizes = [8, 8, 16], strides = [1, 1, 1]} : vector<8x8x32xf32> to vector<8x8x16xf32>
    %40 = vector.broadcast %38 : vector<8x8x1xf32> to vector<8x8x16xf32>
    %41 = arith.mulf %40, %39 : vector<8x8x16xf32>
    %cst_25 = arith.constant dense<0.000000e+00> : vector<8x16xf32>
    %42 = vector.multi_reduction <add>, %41, %cst_25 [1] : vector<8x8x16xf32> to vector<8x16xf32>
    %43 = arith.truncf %42 : vector<8x16xf32> to vector<8x16xbf16>
    %c0_26 = arith.constant 0 : index
    %c0_27 = arith.constant 0 : index
    %44 = vector.load %arg11[%c0_26, %c0_27] : memref<32x32xbf16, #tpu.memory_space<vmem>>, vector<16x32xbf16>
    %cst_28 = arith.constant dense<0.000000e+00> : vector<8x32xf32>
    %45 = tpu.matmul %43, %44, %cst_28 {dimension_numbers = #tpu.dot_dimension_numbers<[1], [0], [0], [1], [0, 0, 1, 1], [], []>} : vector<8x16xbf16>, vector<16x32xbf16>, vector<8x32xf32> -> vector<8x32xf32>
    %46 = vector.extract_strided_slice %23 {offsets = [0, 0, 16], sizes = [8, 8, 16], strides = [1, 1, 1]} : vector<8x8x32xf32> to vector<8x8x16xf32>
    %cst_29 = arith.constant dense<0.000000e+00> : vector<8x8xf32>
    %47 = vector.multi_reduction <add>, %46, %cst_29 [2] : vector<8x8x16xf32> to vector<8x8xf32>
    %48 = arith.addf %47, %20 : vector<8x8xf32>
    %cst_30 = arith.constant dense<0xFF800000> : vector<8xf32>
    %49 = vector.multi_reduction <maximumf>, %48, %cst_30 [1] : vector<8x8xf32> to vector<8xf32>
    %50 = vector.shape_cast %49 : vector<8xf32> to vector<8x1xf32>
    %51 = vector.broadcast %50 : vector<8x1xf32> to vector<8x8xf32>
    %52 = arith.subf %48, %51 : vector<8x8xf32>
    %53 = math.exp %52 : vector<8x8xf32>
    %cst_31 = arith.constant dense<0.000000e+00> : vector<8xf32>
    %54 = vector.multi_reduction <add>, %53, %cst_31 [1] : vector<8x8xf32> to vector<8xf32>
    %55 = vector.shape_cast %54 : vector<8xf32> to vector<8x1xf32>
    %56 = tpu.reciprocal %55 {approx = true} : vector<8x1xf32> -> vector<8x1xf32>
    %57 = vector.broadcast %56 : vector<8x1xf32> to vector<8x8xf32>
    %58 = arith.mulf %53, %57 : vector<8x8xf32>
    %c0_32 = arith.constant 0 : index
    %c40 = arith.constant 40 : index
    %59 = vector.load %arg13[%c0_32, %c40] : memref<8x48xf32, #tpu.memory_space<vmem>>, vector<8x8xf32>
    tpu.vector_store %arg13[%c0_32, %c40], %58 {strides = array<i32>} : memref<8x48xf32, #tpu.memory_space<vmem>>, vector<8x8xf32>,
    %60 = vector.shape_cast %58 : vector<8x8xf32> to vector<8x8x1xf32>
    %61 = vector.extract_strided_slice %19 {offsets = [0, 0, 16], sizes = [8, 8, 16], strides = [1, 1, 1]} : vector<8x8x32xf32> to vector<8x8x16xf32>
    %62 = vector.broadcast %60 : vector<8x8x1xf32> to vector<8x8x16xf32>
    %63 = arith.mulf %62, %61 : vector<8x8x16xf32>
    %cst_33 = arith.constant dense<0.000000e+00> : vector<8x16xf32>
    %64 = vector.multi_reduction <add>, %63, %cst_33 [1] : vector<8x8x16xf32> to vector<8x16xf32>
    %65 = arith.truncf %64 : vector<8x16xf32> to vector<8x16xbf16>
    %c16 = arith.constant 16 : index
    %c0_34 = arith.constant 0 : index
    %66 = vector.load %arg11[%c16, %c0_34] : memref<32x32xbf16, #tpu.memory_space<vmem>>, vector<16x32xbf16>
    %cst_35 = arith.constant dense<0.000000e+00> : vector<8x32xf32>
    %67 = tpu.matmul %65, %66, %cst_35 {dimension_numbers = #tpu.dot_dimension_numbers<[1], [0], [0], [1], [0, 0, 1, 1], [], []>} : vector<8x16xbf16>, vector<16x32xbf16>, vector<8x32xf32> -> vector<8x32xf32>
    %68 = arith.addf %45, %67 : vector<8x32xf32>
    %c0_36 = arith.constant 0 : index
    %c0_37 = arith.constant 0 : index
    %69 = vector.load %arg12[%c0_36, %c0_37] : memref<1x32xf32, #tpu.memory_space<vmem>>, vector<1x32xf32>
    %70 = vector.broadcast %69 : vector<1x32xf32> to vector<8x32xf32>
    %71 = arith.addf %68, %70 : vector<8x32xf32>
    %c0_38 = arith.constant 0 : index
    %c0_39 = arith.constant 0 : index
    %72 = vector.load %arg13[%c0_38, %c0_39] : memref<8x48xf32, #tpu.memory_space<vmem>>, vector<8x32xf32>
    tpu.vector_store %arg13[%c0_38, %c0_39], %71 {strides = array<i32>} : memref<8x48xf32, #tpu.memory_space<vmem>>, vector<8x32xf32>,
    return
  }
  func.func @transform_0(%arg0: i32) -> (i32, i32) {
    %c0_i32 = arith.constant 0 : i32
    %c0_i32_0 = arith.constant 0 : i32
    return %arg0, %c0_i32 : i32, i32
  }
  func.func @transform_1(%arg0: i32) -> (i32, i32) {
    %c0_i32 = arith.constant 0 : i32
    %c0_i32_0 = arith.constant 0 : i32
    return %arg0, %c0_i32 : i32, i32
  }
  func.func @transform_2(%arg0: i32) -> (i32, i32) {
    %c0_i32 = arith.constant 0 : i32
    %c0_i32_0 = arith.constant 0 : i32
    return %arg0, %c0_i32 : i32, i32
  }
  func.func @transform_3(%arg0: i32) -> (i32, i32) {
    %c0_i32 = arith.constant 0 : i32
    %c0_i32_0 = arith.constant 0 : i32
    return %arg0, %c0_i32 : i32, i32
  }
  func.func @transform_4(%arg0: i32) -> (i32, i32) {
    %c0_i32 = arith.constant 0 : i32
    %c0_i32_0 = arith.constant 0 : i32
    %c0_i32_1 = arith.constant 0 : i32
    return %c0_i32, %c0_i32_0 : i32, i32
  }
  func.func @transform_5(%arg0: i32) -> (i32, i32) {
    %c0_i32 = arith.constant 0 : i32
    %c0_i32_0 = arith.constant 0 : i32
    %c0_i32_1 = arith.constant 0 : i32
    return %c0_i32, %c0_i32_0 : i32, i32
  }
  func.func @transform_6(%arg0: i32) -> (i32, i32) {
    %c0_i32 = arith.constant 0 : i32
    %c0_i32_0 = arith.constant 0 : i32
    %c0_i32_1 = arith.constant 0 : i32
    return %c0_i32, %c0_i32_0 : i32, i32
  }
  func.func @transform_7(%arg0: i32) -> (i32, i32) {
    %c0_i32 = arith.constant 0 : i32
    %c0_i32_0 = arith.constant 0 : i32
    %c0_i32_1 = arith.constant 0 : i32
    return %c0_i32, %c0_i32_0 : i32, i32
  }
  func.func @transform_8(%arg0: i32) -> (i32, i32) {
    %c0_i32 = arith.constant 0 : i32
    %c0_i32_0 = arith.constant 0 : i32
    %c0_i32_1 = arith.constant 0 : i32
    return %c0_i32, %c0_i32_0 : i32, i32
  }
  func.func @transform_9(%arg0: i32) -> (i32, i32) {
    %c0_i32 = arith.constant 0 : i32
    %c0_i32_0 = arith.constant 0 : i32
    %c0_i32_1 = arith.constant 0 : i32
    return %c0_i32, %c0_i32_0 : i32, i32
  }
  func.func @transform_10(%arg0: i32) -> (i32, i32) {
    %c0_i32 = arith.constant 0 : i32
    %c0_i32_0 = arith.constant 0 : i32
    %c0_i32_1 = arith.constant 0 : i32
    return %c0_i32, %c0_i32_0 : i32, i32
  }
  func.func @transform_11(%arg0: i32) -> (i32, i32) {
    %c0_i32 = arith.constant 0 : i32
    %c0_i32_0 = arith.constant 0 : i32
    %c0_i32_1 = arith.constant 0 : i32
    return %c0_i32, %c0_i32_0 : i32, i32
  }
  func.func @transform_12(%arg0: i32) -> (i32, i32) {
    %c0_i32 = arith.constant 0 : i32
    %c0_i32_0 = arith.constant 0 : i32
    return %arg0, %c0_i32 : i32, i32
  }
}

</mosaic_0001>

<llo_original>
// kernel: tpu_custom_call.1
$region0: #{tpu_custom_call.1}
  #allocation0 [shape = 'u32[]', space=smem, size = 0x4, offset = 0x4, fixed_abs, tag = 'smem constant byte address 0x4 - core index']
  #allocation1 [shape = 'u32[144,128]{1,0:T(1,128)}', space=vmem, size = 0x12000, scoped, tag = 'internal scratch']
  %s0 = inlined_call_operand.hbm [shape: f32[8,32], index: 0, kind: input, shape index: {}]
  %s1 = inlined_call_operand.vmem [shape: bf16[64,32], index: 1, kind: input, shape index: {}]
  %s2 = inlined_call_operand.vmem [shape: bf16[64,32], index: 2, kind: input, shape index: {}]
  %s3 = inlined_call_operand.hbm [shape: f32[8,8], index: 3, kind: input, shape index: {}]
  %s4 = inlined_call_operand.vmem [shape: f32[32,32], index: 4, kind: input, shape index: {}]
  %s5 = inlined_call_operand.vmem [shape: f32[1,32], index: 5, kind: input, shape index: {}]
  %s6 = inlined_call_operand.vmem [shape: bf16[32,32], index: 6, kind: input, shape index: {}]
  %s7 = inlined_call_operand.vmem [shape: f32[1,32], index: 7, kind: input, shape index: {}]
  %s8 = inlined_call_operand.vmem [shape: bf16[32,32], index: 8, kind: input, shape index: {}]
  %s9 = inlined_call_operand.vmem [shape: f32[1,32], index: 9, kind: input, shape index: {}]
  %s10 = inlined_call_operand.vmem [shape: bf16[32,32], index: 10, kind: input, shape index: {}]
  %s11 = inlined_call_operand.vmem [shape: f32[1,32], index: 11, kind: input, shape index: {}]
  %s12 = inlined_call_operand.hbm [shape: f32[8,48], index: 12, kind: output, shape index: {}]
  %s13 = sld [smem:[#allocation0]]
  $region66: #{tpu_custom_call.1} parent=0
    _
  %s15 = ssub.s32 1, %s13
  %s16 = scalar_select 0, %s15, %s13
  $region1: #{tpu_custom_call.1} parent=0
    #allocation2 [shape = 'u8[4096]{0}', space=vmem, size = 0x1000, scoped, tag = 'input window, operand 0, single buffered']
    #allocation3 [shape = 's32[1]{0}', space=sflag, size = 0x4, scoped, tag = 'scoped memory for tpu_custom_call.1']
    #allocation4 [shape = 's32[1]{0}', space=sflag, size = 0x4, scoped, tag = 'scoped memory for tpu_custom_call.1']
    #allocation5 [shape = 'u8[4096]{0}', space=vmem, size = 0x1000, scoped, tag = 'input window, operand 3, single buffered']
    #allocation6 [shape = 's32[1]{0}', space=sflag, size = 0x4, scoped, tag = 'scoped memory for tpu_custom_call.1']
    #allocation7 [shape = 'u8[4096]{0}', space=vmem, size = 0x1000, scoped, tag = 'output window, operand 0, single buffered']
    %17 = vsyncpa [#allocation3], 0
    %18 = vsyncpa [#allocation6], 0
    %19 = vsyncpa [#allocation4], 0
    // Predicated region
    $region2: #{tpu_custom_call.1} parent=1 // pred_check
      _
    $region3: #{tpu_custom_call.1} parent=1 // pred_check_branch
      %21 = sbr.rel (0) target = $region5
    $region4: #{tpu_custom_call.1} parent=1 // pred_region
      %s23 = ssub.s32 128, 128
      %24 = vsyncadd [#allocation3], %s23
      %s26 = sshll.u32 [#allocation2], 4
      %s27 = int_to_ptr.vmem [resolvable:$true] %s26
      %29 = dma.hbm_to_vmem [thread:$0]  %s0, 128, %s27, [#allocation3]
    $region5: #{tpu_custom_call.1} parent=1 // pred_fallthru
      _
    // Predicated region
    $region6: #{tpu_custom_call.1} parent=1 // pred_check
      _
    $region7: #{tpu_custom_call.1} parent=1 // pred_check_branch
      %31 = sbr.rel (0) target = $region9
    $region8: #{tpu_custom_call.1} parent=1 // pred_region
      _
    $region9: #{tpu_custom_call.1} parent=1 // pred_fallthru
      _
    // Predicated region
    $region10: #{tpu_custom_call.1} parent=1 // pred_check
      _
    $region11: #{tpu_custom_call.1} parent=1 // pred_check_branch
      %33 = sbr.rel (0) target = $region13
    $region12: #{tpu_custom_call.1} parent=1 // pred_region
      _
    $region13: #{tpu_custom_call.1} parent=1 // pred_fallthru
      _
    // Predicated region
    $region14: #{tpu_custom_call.1} parent=1 // pred_check
      _
    $region15: #{tpu_custom_call.1} parent=1 // pred_check_branch
      %35 = sbr.rel (0) target = $region17
    $region16: #{tpu_custom_call.1} parent=1 // pred_region
      %s37 = ssub.s32 128, 128
      %38 = vsyncadd [#allocation6], %s37
      %s40 = sshll.u32 [#allocation5], 4
      %s41 = int_to_ptr.vmem [resolvable:$true] %s40
      %43 = dma.hbm_to_vmem [thread:$0]  %s3, 128, %s41, [#allocation6]
    $region17: #{tpu_custom_call.1} parent=1 // pred_fallthru
      _
    // Predicated region
    $region18: #{tpu_custom_call.1} parent=1 // pred_check
      _
    $region19: #{tpu_custom_call.1} parent=1 // pred_check_branch
      %45 = sbr.rel (0) target = $region21
    $region20: #{tpu_custom_call.1} parent=1 // pred_region
      _
    $region21: #{tpu_custom_call.1} parent=1 // pred_fallthru
      _
    // Predicated region
    $region22: #{tpu_custom_call.1} parent=1 // pred_check
      _
    $region23: #{tpu_custom_call.1} parent=1 // pred_check_branch
      %47 = sbr.rel (0) target = $region25
    $region24: #{tpu_custom_call.1} parent=1 // pred_region
      _
    $region25: #{tpu_custom_call.1} parent=1 // pred_fallthru
      _
    // Predicated region
    $region26: #{tpu_custom_call.1} parent=1 // pred_check
      _
    $region27: #{tpu_custom_call.1} parent=1 // pred_check_branch
      %49 = sbr.rel (0) target = $region29
    $region28: #{tpu_custom_call.1} parent=1 // pred_region
      _
    $region29: #{tpu_custom_call.1} parent=1 // pred_fallthru
      _
    // Predicated region
    $region30: #{tpu_custom_call.1} parent=1 // pred_check
      _
    $region31: #{tpu_custom_call.1} parent=1 // pred_check_branch
      %51 = sbr.rel (0) target = $region33
    $region32: #{tpu_custom_call.1} parent=1 // pred_region
      _
    $region33: #{tpu_custom_call.1} parent=1 // pred_fallthru
      _
    // Predicated region
    $region34: #{tpu_custom_call.1} parent=1 // pred_check
      _
    $region35: #{tpu_custom_call.1} parent=1 // pred_check_branch
      %53 = sbr.rel (0) target = $region37
    $region36: #{tpu_custom_call.1} parent=1 // pred_region
      _
    $region37: #{tpu_custom_call.1} parent=1 // pred_fallthru
      _
    // Predicated region
    $region38: #{tpu_custom_call.1} parent=1 // pred_check
      _
    $region39: #{tpu_custom_call.1} parent=1 // pred_check_branch
      %55 = sbr.rel (0) target = $region41
    $region40: #{tpu_custom_call.1} parent=1 // pred_region
      _
    $region41: #{tpu_custom_call.1} parent=1 // pred_fallthru
      _
    // Predicated region
    $region42: #{tpu_custom_call.1} parent=1 // pred_check
      _
    $region43: #{tpu_custom_call.1} parent=1 // pred_check_branch
      %57 = sbr.rel (0) target = $region45
    $region44: #{tpu_custom_call.1} parent=1 // pred_region
      _
    $region45: #{tpu_custom_call.1} parent=1 // pred_fallthru
      _
    // Predicated region
    $region46: #{tpu_custom_call.1} parent=1 // pred_check
      _
    $region47: #{tpu_custom_call.1} parent=1 // pred_check_branch
      %59 = sbr.rel (0) target = $region49
    $region48: #{tpu_custom_call.1} parent=1 // pred_region
      _
    $region49: #{tpu_custom_call.1} parent=1 // pred_fallthru
      _
    // Predicated region
    $region50: #{tpu_custom_call.1} parent=1 // pred_check
      _
    $region51: #{tpu_custom_call.1} parent=1 // pred_check_branch
      %61 = sbr.rel (0) target = $region53
    $region52: #{tpu_custom_call.1} parent=1 // pred_region
      %62 = dma.done [#allocation3], 128
    $region53: #{tpu_custom_call.1} parent=1 // pred_fallthru
      _
    // Predicated region
    $region54: #{tpu_custom_call.1} parent=1 // pred_check
      _
    $region55: #{tpu_custom_call.1} parent=1 // pred_check_branch
      %64 = sbr.rel (0) target = $region57
    $region56: #{tpu_custom_call.1} parent=1 // pred_region
      %65 = dma.done [#allocation6], 128
    $region57: #{tpu_custom_call.1} parent=1 // pred_fallthru
      _
    %v67 = vld [vmem:[#allocation2] sm:$0xff]
    %v68 = vld [vmem:[%s4] sm:$0xff]
    %v69 = vld [vmem:[%s4 + $0x8] sm:$0xff]
    %v70 = vld [vmem:[%s4 + $0x10] sm:$0xff]
    %v71 = vld [vmem:[%s4 + $0x18] sm:$0xff]
    %v72 = vld [vmem:[%s5] sm:$0x1]
    %v74 = vlaneseq
    %v75 = vshrl.u32 %v74, 7
    %v76 = vsub.s32 0, %v75
    %v77 = vrot.slane %v72, %v76
    %vm79 = vcmask 261120
    %v81 = vsel %vm79, %v67, 0
    %83 = vmatprep.subr.mxu0 0.0
    %84 = vmatpush1.msra.mxu0 0.0
    %85 = vmatprep.subr.mxu0 0.0
    %86 = vmatpush1.msra.mxu0 0.0
    %87 = vmatprep.subr.mxu0 0.0
    %88 = vmatpush1.msra.mxu0 0.0
    %89 = vmatprep.subr.mxu0 0.0
    %90 = vmatpush1.msra.mxu0 0.0
    %91 = vmatprep.subr.mxu0 0.0
    %92 = vmatpush1.msra.mxu0 0.0
    %93 = vmatprep.subr.mxu0 0.0
    %94 = vmatpush1.msra.mxu0 0.0
    %95 = vmatprep.subr.mxu0 0.0
    %96 = vmatpush1.msra.mxu0 0.0
    %97 = vmatprep.subr.mxu0 0.0
    %98 = vmatpush1.msra.mxu0 0.0
    %99 = vmatprep.subr.mxu0 0.0
    %100 = vmatpush1.msra.mxu0 0.0
    %101 = vmatprep.subr.mxu0 0.0
    %102 = vmatpush1.msra.mxu0 0.0
    %103 = vmatprep.subr.mxu0 0.0
    %104 = vmatpush1.msra.mxu0 0.0
    %105 = vmatprep.subr.mxu0 0.0
    %106 = vmatpush1.msra.mxu0 0.0
    %107 = vmatprep.subr.mxu0 0.0
    %108 = vmatpush1.msra.mxu0 %v71
    %109 = vmatprep.subr.mxu0 0.0
    %110 = vmatpush1.msra.mxu0 %v70
    %111 = vmatprep.subr.mxu0 0.0
    %112 = vmatpush1.msra.mxu0 %v69
    %113 = vmatprep.subr.mxu0 0.0
    %114 = vmatpush1.msra.mxu0 %v68
    %115 = vmatprep.subr.mxu0 0.0
    %116 = vmatpush2.msra.mxu0 0.0
    %117 = vmatprep.subr.mxu0 0.0
    %118 = vmatpush2.msra.mxu0 0.0
    %119 = vmatprep.subr.mxu0 0.0
    %120 = vmatpush2.msra.mxu0 0.0
    %121 = vmatprep.subr.mxu0 0.0
    %122 = vmatpush2.msra.mxu0 0.0
    %123 = vmatprep.subr.mxu0 0.0
    %124 = vmatpush2.msra.mxu0 0.0
    %125 = vmatprep.subr.mxu0 0.0
    %126 = vmatpush2.msra.mxu0 0.0
    %127 = vmatprep.subr.mxu0 0.0
    %128 = vmatpush2.msra.mxu0 0.0
    %129 = vmatprep.subr.mxu0 0.0
    %130 = vmatpush2.msra.mxu0 0.0
    %131 = vmatprep.subr.mxu0 0.0
    %132 = vmatpush2.msra.mxu0 0.0
    %133 = vmatprep.subr.mxu0 0.0
    %134 = vmatpush2.msra.mxu0 0.0
    %135 = vmatprep.subr.mxu0 0.0
    %136 = vmatpush2.msra.mxu0 0.0
    %137 = vmatprep.subr.mxu0 0.0
    %138 = vmatpush2.msra.mxu0 0.0
    %139 = vmatprep.subr.mxu0 0.0
    %140 = vmatpush2.msra.mxu0 0.0
    %141 = vmatprep.subr.mxu0 0.0
    %142 = vmatpush2.msra.mxu0 0.0
    %143 = vmatprep.subr.mxu0 0.0
    %144 = vmatpush2.msra.mxu0 0.0
    %145 = vmatprep.subr.mxu0 0.0
    %146 = vmatpush2.msra.mxu0 0.0
    %147 = vmatprep.mubr.f32.mxu0 0.0
    %148 = vmatmul.mubr.f32.gmra.mxu0 %v81
    %v149 = vpop.f32.mrf.mxu0
    %v150 = vadd.f32 %v77, %v149
    %v151 = vpop.f32.mrf.mxu0
    %152 = vdwg.mxu0
    %v153 = vld [vmem:[%s1] sm:$0xf]
    %v154 = vld [vmem:[%s1 + $0x4] sm:$0xf]
    %v155 = vld [vmem:[%s1 + $0x8] sm:$0xf]
    %v156 = vld [vmem:[%s1 + $0xc] sm:$0xf]
    %v157 = vld [vmem:[%s1 + $0x10] sm:$0xf]
    %v158 = vld [vmem:[%s1 + $0x14] sm:$0xf]
    %v159 = vld [vmem:[%s1 + $0x18] sm:$0xf]
    %v160 = vld [vmem:[%s1 + $0x1c] sm:$0xf]
    %v161 = vld [vmem:[%s6] sm:$0xf]
    %v162 = vld [vmem:[%s6 + $0x4] sm:$0xf]
    %v163 = vld [vmem:[%s6 + $0x8] sm:$0xf]
    %v164 = vld [vmem:[%s6 + $0xc] sm:$0xf]
    %v165 = vld [vmem:[%s7] sm:$0x1]
    %v167 = vlaneseq
    %v168 = vshrl.u32 %v167, 7
    %v169 = vsub.s32 0, %v168
    %v170 = vrot.slane %v165, %v169
    %v180 = vunpack.c.l.b16 %v153
    %v181 = vunpack.c.l.b16 %v154
    %v182 = vunpack.c.l.b16 %v155
    %v183 = vunpack.c.l.b16 %v156
    %v184 = vunpack.c.l.b16 %v157
    %v185 = vunpack.c.l.b16 %v158
    %v186 = vunpack.c.l.b16 %v159
    %v187 = vunpack.c.l.b16 %v160
    %v188 = vpack.c.b16 %v181, %v180
    %v189 = vpack.c.b16 %v183, %v182
    %v190 = vpack.c.b16 %v185, %v184
    %v191 = vpack.c.b16 %v187, %v186
    %v196 = vunpack.c.l.b16 %v161
    %v197 = vunpack.c.l.b16 %v162
    %v198 = vunpack.c.l.b16 %v163
    %v199 = vunpack.c.l.b16 %v164
    %v200 = vpack.c.b16 %v197, %v196
    %v201 = vpack.c.b16 %v199, %v198
    %v205 = vsel %vm79, %v188, 0
    %v208 = vsel %vm79, %v189, 0
    %v211 = vsel %vm79, %v190, 0
    %v214 = vsel %vm79, %v191, 0
    %216 = vmatprep.subr.bf16.mxu0 0
    %217 = vmatpush1.bf16.msra.mxu0 0
    %218 = vmatprep.subr.bf16.mxu0 0
    %219 = vmatpush1.bf16.msra.mxu0 0
    %220 = vmatprep.subr.bf16.mxu0 0
    %221 = vmatpush1.bf16.msra.mxu0 0
    %222 = vmatprep.subr.bf16.mxu0 0
    %223 = vmatpush1.bf16.msra.mxu0 0
    %224 = vmatprep.subr.bf16.mxu0 0
    %225 = vmatpush1.bf16.msra.mxu0 0
    %226 = vmatprep.subr.bf16.mxu0 0
    %227 = vmatpush1.bf16.msra.mxu0 0
    %228 = vmatprep.subr.bf16.mxu0 0
    %229 = vmatpush1.bf16.msra.mxu0 %v201
    %230 = vmatprep.subr.bf16.mxu0 0
    %231 = vmatpush1.bf16.msra.mxu0 %v200
    %232 = vmatprep.subr.bf16.mxu0 0
    %233 = vmatpush2.bf16.msra.mxu0 0
    %234 = vmatprep.subr.bf16.mxu0 0
    %235 = vmatpush2.bf16.msra.mxu0 0
    %236 = vmatprep.subr.bf16.mxu0 0
    %237 = vmatpush2.bf16.msra.mxu0 0
    %238 = vmatprep.subr.bf16.mxu0 0
    %239 = vmatpush2.bf16.msra.mxu0 0
    %240 = vmatprep.subr.bf16.mxu0 0
    %241 = vmatpush2.bf16.msra.mxu0 0
    %242 = vmatprep.subr.bf16.mxu0 0
    %243 = vmatpush2.bf16.msra.mxu0 0
    %244 = vmatprep.subr.bf16.mxu0 0
    %245 = vmatpush2.bf16.msra.mxu0 0
    %246 = vmatprep.subr.bf16.mxu0 0
    %247 = vmatpush2.bf16.msra.mxu0 0
    %248 = vmatprep.mubr.bf16.mxu0 0
    %249 = vmatmul.mubr.bf16.gmra.mxu0 %v205
    %v250 = vpop.f32.mrf.mxu0
    %v251 = vadd.f32 %v170, %v250
    %v252 = vpop.f32.mrf.mxu0
    %v253 = vpop.f32.mrf.mxu0
    %v254 = vadd.f32 %v170, %v253
    %v255 = vpop.f32.mrf.mxu0
    %256 = vmatprep.mubr.bf16.mxu0 0
    %257 = vmatmul.mubr.bf16.gmra.mxu0 %v208
    %v258 = vpop.f32.mrf.mxu0
    %v259 = vadd.f32 %v170, %v258
    %v260 = vpop.f32.mrf.mxu0
    %v261 = vpop.f32.mrf.mxu0
    %v262 = vadd.f32 %v170, %v261
    %v263 = vpop.f32.mrf.mxu0
    %264 = vmatprep.mubr.bf16.mxu0 0
    %265 = vmatmul.mubr.bf16.gmra.mxu0 %v211
    %v266 = vpop.f32.mrf.mxu0
    %v267 = vadd.f32 %v170, %v266
    %v268 = vpop.f32.mrf.mxu0
    %v269 = vpop.f32.mrf.mxu0
    %v270 = vadd.f32 %v170, %v269
    %v271 = vpop.f32.mrf.mxu0
    %272 = vmatprep.mubr.bf16.mxu0 0
    %273 = vmatmul.mubr.bf16.gmra.mxu0 %v214
    %v274 = vpop.f32.mrf.mxu0
    %v275 = vadd.f32 %v170, %v274
    %v276 = vpop.f32.mrf.mxu0
    %v277 = vpop.f32.mrf.mxu0
    %v278 = vadd.f32 %v170, %v277
    %v279 = vpop.f32.mrf.mxu0
    %280 = vdwg.mxu0
    %v281 = vld [vmem:[%s2] sm:$0xf]
    %v282 = vld [vmem:[%s2 + $0x4] sm:$0xf]
    %v283 = vld [vmem:[%s2 + $0x8] sm:$0xf]
    %v284 = vld [vmem:[%s2 + $0xc] sm:$0xf]
    %v285 = vld [vmem:[%s2 + $0x10] sm:$0xf]
    %v286 = vld [vmem:[%s2 + $0x14] sm:$0xf]
    %v287 = vld [vmem:[%s2 + $0x18] sm:$0xf]
    %v288 = vld [vmem:[%s2 + $0x1c] sm:$0xf]
    %v289 = vld [vmem:[%s8] sm:$0xf]
    %v290 = vld [vmem:[%s8 + $0x4] sm:$0xf]
    %v291 = vld [vmem:[%s8 + $0x8] sm:$0xf]
    %v292 = vld [vmem:[%s8 + $0xc] sm:$0xf]
    %v293 = vld [vmem:[%s9] sm:$0x1]
    %v295 = vlaneseq
    %v296 = vshrl.u32 %v295, 7
    %v297 = vsub.s32 0, %v296
    %v298 = vrot.slane %v293, %v297
    %v308 = vunpack.c.l.b16 %v281
    %v309 = vunpack.c.l.b16 %v282
    %v310 = vunpack.c.l.b16 %v283
    %v311 = vunpack.c.l.b16 %v284
    %v312 = vunpack.c.l.b16 %v285
    %v313 = vunpack.c.l.b16 %v286
    %v314 = vunpack.c.l.b16 %v287
    %v315 = vunpack.c.l.b16 %v288
    %v316 = vpack.c.b16 %v309, %v308
    %v317 = vpack.c.b16 %v311, %v310
    %v318 = vpack.c.b16 %v313, %v312
    %v319 = vpack.c.b16 %v315, %v314
    %v324 = vunpack.c.l.b16 %v289
    %v325 = vunpack.c.l.b16 %v290
    %v326 = vunpack.c.l.b16 %v291
    %v327 = vunpack.c.l.b16 %v292
    %v328 = vpack.c.b16 %v325, %v324
    %v329 = vpack.c.b16 %v327, %v326
    %v333 = vsel %vm79, %v316, 0
    %v336 = vsel %vm79, %v317, 0
    %v339 = vsel %vm79, %v318, 0
    %v342 = vsel %vm79, %v319, 0
    %344 = vmatprep.subr.bf16.mxu0 0
    %345 = vmatpush1.bf16.msra.mxu0 0
    %346 = vmatprep.subr.bf16.mxu0 0
    %347 = vmatpush1.bf16.msra.mxu0 0
    %348 = vmatprep.subr.bf16.mxu0 0
    %349 = vmatpush1.bf16.msra.mxu0 0
    %350 = vmatprep.subr.bf16.mxu0 0
    %351 = vmatpush1.bf16.msra.mxu0 0
    %352 = vmatprep.subr.bf16.mxu0 0
    %353 = vmatpush1.bf16.msra.mxu0 0
    %354 = vmatprep.subr.bf16.mxu0 0
    %355 = vmatpush1.bf16.msra.mxu0 0
    %356 = vmatprep.subr.bf16.mxu0 0
    %357 = vmatpush1.bf16.msra.mxu0 %v329
    %358 = vmatprep.subr.bf16.mxu0 0
    %359 = vmatpush1.bf16.msra.mxu0 %v328
    %360 = vmatprep.subr.bf16.mxu0 0
    %361 = vmatpush2.bf16.msra.mxu0 0
    %362 = vmatprep.subr.bf16.mxu0 0
    %363 = vmatpush2.bf16.msra.mxu0 0
    %364 = vmatprep.subr.bf16.mxu0 0
    %365 = vmatpush2.bf16.msra.mxu0 0
    %366 = vmatprep.subr.bf16.mxu0 0
    %367 = vmatpush2.bf16.msra.mxu0 0
    %368 = vmatprep.subr.bf16.mxu0 0
    %369 = vmatpush2.bf16.msra.mxu0 0
    %370 = vmatprep.subr.bf16.mxu0 0
    %371 = vmatpush2.bf16.msra.mxu0 0
    %372 = vmatprep.subr.bf16.mxu0 0
    %373 = vmatpush2.bf16.msra.mxu0 0
    %374 = vmatprep.subr.bf16.mxu0 0
    %375 = vmatpush2.bf16.msra.mxu0 0
    %376 = vmatprep.mubr.bf16.mxu0 0
    %377 = vmatmul.mubr.bf16.gmra.mxu0 %v333
    %v378 = vpop.f32.mrf.mxu0
    %v379 = vadd.f32 %v298, %v378
    %v380 = vpop.f32.mrf.mxu0
    %v381 = vpop.f32.mrf.mxu0
    %v382 = vadd.f32 %v298, %v381
    %v383 = vpop.f32.mrf.mxu0
    %384 = vmatprep.mubr.bf16.mxu0 0
    %385 = vmatmul.mubr.bf16.gmra.mxu0 %v336
    %v386 = vpop.f32.mrf.mxu0
    %v387 = vadd.f32 %v298, %v386
    %v388 = vpop.f32.mrf.mxu0
    %v389 = vpop.f32.mrf.mxu0
    %v390 = vadd.f32 %v298, %v389
    %v391 = vpop.f32.mrf.mxu0
    %392 = vmatprep.mubr.bf16.mxu0 0
    %393 = vmatmul.mubr.bf16.gmra.mxu0 %v339
    %v394 = vpop.f32.mrf.mxu0
    %v395 = vadd.f32 %v298, %v394
    %v396 = vpop.f32.mrf.mxu0
    %v397 = vpop.f32.mrf.mxu0
    %v398 = vadd.f32 %v298, %v397
    %v399 = vpop.f32.mrf.mxu0
    %400 = vmatprep.mubr.bf16.mxu0 0
    %401 = vmatmul.mubr.bf16.gmra.mxu0 %v342
    %v402 = vpop.f32.mrf.mxu0
    %v403 = vadd.f32 %v298, %v402
    %v404 = vpop.f32.mrf.mxu0
    %v405 = vpop.f32.mrf.mxu0
    %v406 = vadd.f32 %v298, %v405
    %v407 = vpop.f32.mrf.mxu0
    %408 = vdwg.mxu0
    %v409 = vld [vmem:[#allocation5] sm:$0xff]
    %v411 = vcombine.high %v150, %v150
    %v413 = vunpack.c.l.s4 1966171168
    %v414 = vunpack.c.0.s8 %v413
    %v415 = vlaneseq
    %v416 = vshrl.u32 %v415, 7
    %v417 = vsub.s32 %v414, %v416
    %v418 = vrot.slane %v150, %v417
    %v420 = vunpack.c.l.s4 1966171168
    %v421 = vunpack.c.0.s8 %v420
    %v422 = vlaneseq
    %v423 = vshrl.u32 %v422, 7
    %v424 = vsub.s32 %v421, %v423
    %v425 = vrot.slane %v411, %v424
    %v426 = vcombine.high %v418, %v418
    %v427 = vcombine.high %v425, %v425
    %v429 = vunpack.c.l.s4 1966171168
    %v430 = vunpack.c.0.s8 %v429
    %v431 = vlaneseq
    %v432 = vshrl.u32 %v431, 7
    %v433 = vsub.s32 %v430, %v432
    %v434 = vrot.slane %v418, %v433
    %v436 = vunpack.c.l.s4 1966171168
    %v437 = vunpack.c.0.s8 %v436
    %v438 = vlaneseq
    %v439 = vshrl.u32 %v438, 7
    %v440 = vsub.s32 %v437, %v439
    %v441 = vrot.slane %v425, %v440
    %v443 = vunpack.c.l.s4 1966171168
    %v444 = vunpack.c.0.s8 %v443
    %v445 = vlaneseq
    %v446 = vshrl.u32 %v445, 7
    %v447 = vsub.s32 %v444, %v446
    %v448 = vrot.slane %v426, %v447
    %v450 = vunpack.c.l.s4 1966171168
    %v451 = vunpack.c.0.s8 %v450
    %v452 = vlaneseq
    %v453 = vshrl.u32 %v452, 7
    %v454 = vsub.s32 %v451, %v453
    %v455 = vrot.slane %v427, %v454
    %v456 = vcombine.high %v434, %v434
    %v457 = vcombine.high %v441, %v441
    %v458 = vcombine.high %v448, %v448
    %v459 = vcombine.high %v455, %v455
    %v460 = vlaneseq
    %v461 = vshrl.u32 %v460, 7
    %v462 = vsub.s32 0, %v461
    %v463 = vrot.slane %v434, %v462
    %v464 = vlaneseq
    %v465 = vshrl.u32 %v464, 7
    %v466 = vsub.s32 0, %v465
    %v467 = vrot.slane %v448, %v466
    %v468 = vlaneseq
    %v469 = vshrl.u32 %v468, 7
    %v470 = vsub.s32 0, %v469
    %v471 = vrot.slane %v456, %v470
    %v472 = vlaneseq
    %v473 = vshrl.u32 %v472, 7
    %v474 = vsub.s32 0, %v473
    %v475 = vrot.slane %v458, %v474
    %v476 = vlaneseq
    %v477 = vshrl.u32 %v476, 7
    %v478 = vsub.s32 0, %v477
    %v479 = vrot.slane %v441, %v478
    %v480 = vlaneseq
    %v481 = vshrl.u32 %v480, 7
    %v482 = vsub.s32 0, %v481
    %v483 = vrot.slane %v455, %v482
    %v484 = vlaneseq
    %v485 = vshrl.u32 %v484, 7
    %v486 = vsub.s32 0, %v485
    %v487 = vrot.slane %v457, %v486
    %v488 = vlaneseq
    %v489 = vshrl.u32 %v488, 7
    %v490 = vsub.s32 0, %v489
    %v491 = vrot.slane %v459, %v490
    %v500 = vmul.f32 %v463, %v251
    %v501 = vmul.f32 %v467, %v254
    %v502 = vmul.f32 %v471, %v259
    %v503 = vmul.f32 %v475, %v262
    %v504 = vmul.f32 %v479, %v267
    %v505 = vmul.f32 %v483, %v270
    %v506 = vmul.f32 %v487, %v275
    %v507 = vmul.f32 %v491, %v278
    %vm508 = vcmask 130048
    %v509 = vsel %vm508, %v500, 0.0
    %510 = vadd.xlane.f32.xlu0 %v509
    %v511 = vpop.xlane.xlu0 %510
    %v512 = vsel %vm508, %v501, 0.0
    %513 = vadd.xlane.f32.xlu0 %v512
    %v514 = vpop.xlane.xlu0 %513
    %v515 = vsel %vm508, %v502, 0.0
    %516 = vadd.xlane.f32.xlu0 %v515
    %v517 = vpop.xlane.xlu0 %516
    %v518 = vsel %vm508, %v503, 0.0
    %519 = vadd.xlane.f32.xlu0 %v518
    %v520 = vpop.xlane.xlu0 %519
    %v521 = vsel %vm508, %v504, 0.0
    %522 = vadd.xlane.f32.xlu0 %v521
    %v523 = vpop.xlane.xlu0 %522
    %v524 = vsel %vm508, %v505, 0.0
    %525 = vadd.xlane.f32.xlu0 %v524
    %v526 = vpop.xlane.xlu0 %525
    %v527 = vsel %vm508, %v506, 0.0
    %528 = vadd.xlane.f32.xlu0 %v527
    %v529 = vpop.xlane.xlu0 %528
    %v530 = vsel %vm508, %v507, 0.0
    %531 = vadd.xlane.f32.xlu0 %v530
    %v532 = vpop.xlane.xlu0 %531
    %v534 = vlaneseq
    %v535 = vshrl.u32 %v534, 7
    %v536 = vsub.s32 0, %v535
    %v537 = vrot.slane %v409, %v536
    %539 = vbcast.lane.b32.xlu0 %v537, 256
    %v540 = vpop.permute.xlu0 %539
    %v541 = vlaneseq
    %v542 = vshrl.u32 %v541, 7
    %v543 = vsub.s32 1, %v542
    %v544 = vrot.slane %v409, %v543
    %546 = vbcast.lane.b32.xlu0 %v544, 256
    %v547 = vpop.permute.xlu0 %546
    %v548 = vlaneseq
    %v549 = vshrl.u32 %v548, 7
    %v550 = vsub.s32 2, %v549
    %v551 = vrot.slane %v409, %v550
    %553 = vbcast.lane.b32.xlu0 %v551, 256
    %v554 = vpop.permute.xlu0 %553
    %v555 = vlaneseq
    %v556 = vshrl.u32 %v555, 7
    %v557 = vsub.s32 3, %v556
    %v558 = vrot.slane %v409, %v557
    %560 = vbcast.lane.b32.xlu0 %v558, 256
    %v561 = vpop.permute.xlu0 %560
    %v562 = vlaneseq
    %v563 = vshrl.u32 %v562, 7
    %v564 = vsub.s32 4, %v563
    %v565 = vrot.slane %v409, %v564
    %567 = vbcast.lane.b32.xlu0 %v565, 256
    %v568 = vpop.permute.xlu0 %567
    %v569 = vlaneseq
    %v570 = vshrl.u32 %v569, 7
    %v571 = vsub.s32 5, %v570
    %v572 = vrot.slane %v409, %v571
    %574 = vbcast.lane.b32.xlu0 %v572, 256
    %v575 = vpop.permute.xlu0 %574
    %v576 = vlaneseq
    %v577 = vshrl.u32 %v576, 7
    %v578 = vsub.s32 6, %v577
    %v579 = vrot.slane %v409, %v578
    %581 = vbcast.lane.b32.xlu0 %v579, 256
    %v582 = vpop.permute.xlu0 %581
    %v583 = vlaneseq
    %v584 = vshrl.u32 %v583, 7
    %v585 = vsub.s32 7, %v584
    %v586 = vrot.slane %v409, %v585
    %588 = vbcast.lane.b32.xlu0 %v586, 256
    %v589 = vpop.permute.xlu0 %588
    %v598 = vadd.f32 %v511, %v540
    %v599 = vadd.f32 %v514, %v547
    %v600 = vadd.f32 %v517, %v554
    %v601 = vadd.f32 %v520, %v561
    %v602 = vadd.f32 %v523, %v568
    %v603 = vadd.f32 %v526, %v575
    %v604 = vadd.f32 %v529, %v582
    %v605 = vadd.f32 %v532, %v589
    %614 = vset.pattern.permute.xlu0 0
    %615 = vperm.xlu0 %614, %v598
    %v616 = vpop.permute.xlu0 %615
    %617 = vset.pattern.permute.xlu0 0
    %618 = vperm.xlu0 %617, %v599
    %v619 = vpop.permute.xlu0 %618
    %620 = vset.pattern.permute.xlu0 0
    %621 = vperm.xlu0 %620, %v600
    %v622 = vpop.permute.xlu0 %621
    %623 = vset.pattern.permute.xlu0 0
    %624 = vperm.xlu0 %623, %v601
    %v625 = vpop.permute.xlu0 %624
    %626 = vset.pattern.permute.xlu0 0
    %627 = vperm.xlu0 %626, %v602
    %v628 = vpop.permute.xlu0 %627
    %629 = vset.pattern.permute.xlu0 0
    %630 = vperm.xlu0 %629, %v603
    %v631 = vpop.permute.xlu0 %630
    %632 = vset.pattern.permute.xlu0 0
    %633 = vperm.xlu0 %632, %v604
    %v634 = vpop.permute.xlu0 %633
    %635 = vset.pattern.permute.xlu0 0
    %636 = vperm.xlu0 %635, %v605
    %v637 = vpop.permute.xlu0 %636
    %v638 = vlaneseq
    %v639 = vand.u32 %v638, 127
    %v640 = vlaneseq
    %v641 = vshrl.u32 %v640, 7
    %v642 = vsub.s32 %v639, %v641
    %v643 = vrot.slane %v616, %v642
    %v644 = vlaneseq
    %v645 = vshrl.u32 %v644, 7
    %v646 = vsub.s32 %v639, %v645
    %v647 = vrot.slane %v619, %v646
    %v648 = vlaneseq
    %v649 = vshrl.u32 %v648, 7
    %v650 = vsub.s32 %v639, %v649
    %v651 = vrot.slane %v622, %v650
    %v652 = vlaneseq
    %v653 = vshrl.u32 %v652, 7
    %v654 = vsub.s32 %v639, %v653
    %v655 = vrot.slane %v625, %v654
    %v656 = vlaneseq
    %v657 = vshrl.u32 %v656, 7
    %v658 = vsub.s32 %v639, %v657
    %v659 = vrot.slane %v628, %v658
    %v660 = vlaneseq
    %v661 = vshrl.u32 %v660, 7
    %v662 = vsub.s32 %v639, %v661
    %v663 = vrot.slane %v631, %v662
    %v664 = vlaneseq
    %v665 = vshrl.u32 %v664, 7
    %v666 = vsub.s32 %v639, %v665
    %v667 = vrot.slane %v634, %v666
    %v668 = vlaneseq
    %v669 = vshrl.u32 %v668, 7
    %v670 = vsub.s32 %v639, %v669
    %v671 = vrot.slane %v637, %v670
    %vm672 = vcmask 1041409
    %v673 = vsel %vm672, %v647, %v643
    %vm674 = vcmask 1042434
    %v675 = vsel %vm674, %v651, %v673
    %vm676 = vcmask 1043459
    %v677 = vsel %vm676, %v655, %v675
    %vm678 = vcmask 1044484
    %v679 = vsel %vm678, %v659, %v677
    %vm680 = vcmask 1045509
    %v681 = vsel %vm680, %v663, %v679
    %vm682 = vcmask 1046534
    %v683 = vsel %vm682, %v667, %v681
    %vm684 = vcmask 1047559
    %v685 = vsel %vm684, %v671, %v683
    %vm687 = vcmask 64512
    %v688 = vsel %vm687, %v685, -inf
    %689 = vmax.xlane.f32.xlu0 %v688
    %v690 = vpop.xlane.xlu0 %689
    %v692 = vlaneseq
    %v693 = vshrl.u32 %v692, 7
    %v694 = vsub.s32 0, %v693
    %v695 = vrot.slane %v690, %v694
    %v696 = vlaneseq
    %v697 = vshrl.u32 %v696, 7
    %v698 = vsub.s32 1, %v697
    %v699 = vrot.slane %v690, %v698
    %v700 = vlaneseq
    %v701 = vshrl.u32 %v700, 7
    %v702 = vsub.s32 2, %v701
    %v703 = vrot.slane %v690, %v702
    %v704 = vlaneseq
    %v705 = vshrl.u32 %v704, 7
    %v706 = vsub.s32 3, %v705
    %v707 = vrot.slane %v690, %v706
    %v708 = vlaneseq
    %v709 = vshrl.u32 %v708, 7
    %v710 = vsub.s32 4, %v709
    %v711 = vrot.slane %v690, %v710
    %v712 = vlaneseq
    %v713 = vshrl.u32 %v712, 7
    %v714 = vsub.s32 5, %v713
    %v715 = vrot.slane %v690, %v714
    %v716 = vlaneseq
    %v717 = vshrl.u32 %v716, 7
    %v718 = vsub.s32 6, %v717
    %v719 = vrot.slane %v690, %v718
    %v720 = vlaneseq
    %v721 = vshrl.u32 %v720, 7
    %v722 = vsub.s32 7, %v721
    %v723 = vrot.slane %v690, %v722
    %v732 = vsub.f32 %v598, %v695
    %v733 = vsub.f32 %v599, %v699
    %v734 = vsub.f32 %v600, %v703
    %v735 = vsub.f32 %v601, %v707
    %v736 = vsub.f32 %v602, %v711
    %v737 = vsub.f32 %v603, %v715
    %v738 = vsub.f32 %v604, %v719
    %v739 = vsub.f32 %v605, %v723
    %v740 = vmul.f32 %v732, 1.442695
    %v741 = vpow.pop %v740
    %v742 = vmul.f32 %v733, 1.442695
    %v743 = vpow.pop %v742
    %v744 = vmul.f32 %v734, 1.442695
    %v745 = vpow.pop %v744
    %v746 = vmul.f32 %v735, 1.442695
    %v747 = vpow.pop %v746
    %v748 = vmul.f32 %v736, 1.442695
    %v749 = vpow.pop %v748
    %v750 = vmul.f32 %v737, 1.442695
    %v751 = vpow.pop %v750
    %v752 = vmul.f32 %v738, 1.442695
    %v753 = vpow.pop %v752
    %v754 = vmul.f32 %v739, 1.442695
    %v755 = vpow.pop %v754
    %764 = vset.pattern.permute.xlu0 0
    %765 = vperm.xlu0 %764, %v741
    %v766 = vpop.permute.xlu0 %765
    %767 = vset.pattern.permute.xlu0 0
    %768 = vperm.xlu0 %767, %v743
    %v769 = vpop.permute.xlu0 %768
    %770 = vset.pattern.permute.xlu0 0
    %771 = vperm.xlu0 %770, %v745
    %v772 = vpop.permute.xlu0 %771
    %773 = vset.pattern.permute.xlu0 0
    %774 = vperm.xlu0 %773, %v747
    %v775 = vpop.permute.xlu0 %774
    %776 = vset.pattern.permute.xlu0 0
    %777 = vperm.xlu0 %776, %v749
    %v778 = vpop.permute.xlu0 %777
    %779 = vset.pattern.permute.xlu0 0
    %780 = vperm.xlu0 %779, %v751
    %v781 = vpop.permute.xlu0 %780
    %782 = vset.pattern.permute.xlu0 0
    %783 = vperm.xlu0 %782, %v753
    %v784 = vpop.permute.xlu0 %783
    %785 = vset.pattern.permute.xlu0 0
    %786 = vperm.xlu0 %785, %v755
    %v787 = vpop.permute.xlu0 %786
    %v788 = vlaneseq
    %v789 = vshrl.u32 %v788, 7
    %v790 = vsub.s32 %v639, %v789
    %v791 = vrot.slane %v766, %v790
    %v792 = vlaneseq
    %v793 = vshrl.u32 %v792, 7
    %v794 = vsub.s32 %v639, %v793
    %v795 = vrot.slane %v769, %v794
    %v796 = vlaneseq
    %v797 = vshrl.u32 %v796, 7
    %v798 = vsub.s32 %v639, %v797
    %v799 = vrot.slane %v772, %v798
    %v800 = vlaneseq
    %v801 = vshrl.u32 %v800, 7
    %v802 = vsub.s32 %v639, %v801
    %v803 = vrot.slane %v775, %v802
    %v804 = vlaneseq
    %v805 = vshrl.u32 %v804, 7
    %v806 = vsub.s32 %v639, %v805
    %v807 = vrot.slane %v778, %v806
    %v808 = vlaneseq
    %v809 = vshrl.u32 %v808, 7
    %v810 = vsub.s32 %v639, %v809
    %v811 = vrot.slane %v781, %v810
    %v812 = vlaneseq
    %v813 = vshrl.u32 %v812, 7
    %v814 = vsub.s32 %v639, %v813
    %v815 = vrot.slane %v784, %v814
    %v816 = vlaneseq
    %v817 = vshrl.u32 %v816, 7
    %v818 = vsub.s32 %v639, %v817
    %v819 = vrot.slane %v787, %v818
    %v820 = vsel %vm672, %v795, %v791
    %v821 = vsel %vm674, %v799, %v820
    %v822 = vsel %vm676, %v803, %v821
    %v823 = vsel %vm678, %v807, %v822
    %v824 = vsel %vm680, %v811, %v823
    %v825 = vsel %vm682, %v815, %v824
    %v826 = vsel %vm684, %v819, %v825
    %v828 = vsel %vm687, %v826, 0.0
    %829 = vadd.xlane.f32.xlu0 %v828
    %v830 = vpop.xlane.xlu0 %829
    %v831 = vrcp.pop %v830
    %v833 = vlaneseq
    %v834 = vshrl.u32 %v833, 7
    %v835 = vsub.s32 0, %v834
    %v836 = vrot.slane %v831, %v835
    %v837 = vlaneseq
    %v838 = vshrl.u32 %v837, 7
    %v839 = vsub.s32 1, %v838
    %v840 = vrot.slane %v831, %v839
    %v841 = vlaneseq
    %v842 = vshrl.u32 %v841, 7
    %v843 = vsub.s32 2, %v842
    %v844 = vrot.slane %v831, %v843
    %v845 = vlaneseq
    %v846 = vshrl.u32 %v845, 7
    %v847 = vsub.s32 3, %v846
    %v848 = vrot.slane %v831, %v847
    %v849 = vlaneseq
    %v850 = vshrl.u32 %v849, 7
    %v851 = vsub.s32 4, %v850
    %v852 = vrot.slane %v831, %v851
    %v853 = vlaneseq
    %v854 = vshrl.u32 %v853, 7
    %v855 = vsub.s32 5, %v854
    %v856 = vrot.slane %v831, %v855
    %v857 = vlaneseq
    %v858 = vshrl.u32 %v857, 7
    %v859 = vsub.s32 6, %v858
    %v860 = vrot.slane %v831, %v859
    %v861 = vlaneseq
    %v862 = vshrl.u32 %v861, 7
    %v863 = vsub.s32 7, %v862
    %v864 = vrot.slane %v831, %v863
    %v873 = vmul.f32 %v741, %v836
    %v874 = vmul.f32 %v743, %v840
    %v875 = vmul.f32 %v745, %v844
    %v876 = vmul.f32 %v747, %v848
    %v877 = vmul.f32 %v749, %v852
    %v878 = vmul.f32 %v751, %v856
    %v879 = vmul.f32 %v753, %v860
    %v880 = vmul.f32 %v755, %v864
    %889 = vset.pattern.permute.xlu0 0
    %890 = vperm.xlu0 %889, %v873
    %v891 = vpop.permute.xlu0 %890
    %892 = vset.pattern.permute.xlu0 0
    %893 = vperm.xlu0 %892, %v874
    %v894 = vpop.permute.xlu0 %893
    %895 = vset.pattern.permute.xlu0 0
    %896 = vperm.xlu0 %895, %v875
    %v897 = vpop.permute.xlu0 %896
    %898 = vset.pattern.permute.xlu0 0
    %899 = vperm.xlu0 %898, %v876
    %v900 = vpop.permute.xlu0 %899
    %901 = vset.pattern.permute.xlu0 0
    %902 = vperm.xlu0 %901, %v877
    %v903 = vpop.permute.xlu0 %902
    %904 = vset.pattern.permute.xlu0 0
    %905 = vperm.xlu0 %904, %v878
    %v906 = vpop.permute.xlu0 %905
    %907 = vset.pattern.permute.xlu0 0
    %908 = vperm.xlu0 %907, %v879
    %v909 = vpop.permute.xlu0 %908
    %910 = vset.pattern.permute.xlu0 0
    %911 = vperm.xlu0 %910, %v880
    %v912 = vpop.permute.xlu0 %911
    %v913 = vadd.s32 %v639, 4294967264
    %v914 = vlaneseq
    %v915 = vshrl.u32 %v914, 7
    %v916 = vsub.s32 %v913, %v915
    %v917 = vrot.slane %v891, %v916
    %v918 = vlaneseq
    %v919 = vshrl.u32 %v918, 7
    %v920 = vsub.s32 %v913, %v919
    %v921 = vrot.slane %v894, %v920
    %v922 = vlaneseq
    %v923 = vshrl.u32 %v922, 7
    %v924 = vsub.s32 %v913, %v923
    %v925 = vrot.slane %v897, %v924
    %v926 = vlaneseq
    %v927 = vshrl.u32 %v926, 7
    %v928 = vsub.s32 %v913, %v927
    %v929 = vrot.slane %v900, %v928
    %v930 = vlaneseq
    %v931 = vshrl.u32 %v930, 7
    %v932 = vsub.s32 %v913, %v931
    %v933 = vrot.slane %v903, %v932
    %v934 = vlaneseq
    %v935 = vshrl.u32 %v934, 7
    %v936 = vsub.s32 %v913, %v935
    %v937 = vrot.slane %v906, %v936
    %v938 = vlaneseq
    %v939 = vshrl.u32 %v938, 7
    %v940 = vsub.s32 %v913, %v939
    %v941 = vrot.slane %v909, %v940
    %v942 = vlaneseq
    %v943 = vshrl.u32 %v942, 7
    %v944 = vsub.s32 %v913, %v943
    %v945 = vrot.slane %v912, %v944
    %v946 = vsel %vm672, %v921, %v917
    %v947 = vsel %vm674, %v925, %v946
    %v948 = vsel %vm676, %v929, %v947
    %v949 = vsel %vm678, %v933, %v948
    %v950 = vsel %vm680, %v937, %v949
    %v951 = vsel %vm682, %v941, %v950
    %v952 = vsel %vm684, %v945, %v951
    %vm954 = vcmask 326912
    %955 = vst.msk [vmem:[#allocation7] sm:$0xff] %vm954, %v952
    %v964 = vmul.f32 %v891, %v379
    %v965 = vmul.f32 %v894, %v382
    %v966 = vmul.f32 %v897, %v387
    %v967 = vmul.f32 %v900, %v390
    %v968 = vmul.f32 %v903, %v395
    %v969 = vmul.f32 %v906, %v398
    %v970 = vmul.f32 %v909, %v403
    %v971 = vmul.f32 %v912, %v406
    %v972 = vsel %vm508, %v964, 0.0
    %v973 = vrot.slane %v972, 4
    %v974 = vadd.f32 %v972, %v973
    %v975 = vrot.slane %v974, 2
    %v976 = vadd.f32 %v974, %v975
    %v977 = vrot.slane %v976, 1
    %v978 = vadd.f32 %v976, %v977
    %v979 = vsel %vm508, %v965, 0.0
    %v980 = vrot.slane %v979, 4
    %v981 = vadd.f32 %v979, %v980
    %v982 = vrot.slane %v981, 2
    %v983 = vadd.f32 %v981, %v982
    %v984 = vrot.slane %v983, 1
    %v985 = vadd.f32 %v983, %v984
    %v986 = vsel %vm508, %v966, 0.0
    %v987 = vrot.slane %v986, 4
    %v988 = vadd.f32 %v986, %v987
    %v989 = vrot.slane %v988, 2
    %v990 = vadd.f32 %v988, %v989
    %v991 = vrot.slane %v990, 1
    %v992 = vadd.f32 %v990, %v991
    %v993 = vsel %vm508, %v967, 0.0
    %v994 = vrot.slane %v993, 4
    %v995 = vadd.f32 %v993, %v994
    %v996 = vrot.slane %v995, 2
    %v997 = vadd.f32 %v995, %v996
    %v998 = vrot.slane %v997, 1
    %v999 = vadd.f32 %v997, %v998
    %v1000 = vsel %vm508, %v968, 0.0
    %v1001 = vrot.slane %v1000, 4
    %v1002 = vadd.f32 %v1000, %v1001
    %v1003 = vrot.slane %v1002, 2
    %v1004 = vadd.f32 %v1002, %v1003
    %v1005 = vrot.slane %v1004, 1
    %v1006 = vadd.f32 %v1004, %v1005
    %v1007 = vsel %vm508, %v969, 0.0
    %v1008 = vrot.slane %v1007, 4
    %v1009 = vadd.f32 %v1007, %v1008
    %v1010 = vrot.slane %v1009, 2
    %v1011 = vadd.f32 %v1009, %v1010
    %v1012 = vrot.slane %v1011, 1
    %v1013 = vadd.f32 %v1011, %v1012
    %v1014 = vsel %vm508, %v970, 0.0
    %v1015 = vrot.slane %v1014, 4
    %v1016 = vadd.f32 %v1014, %v1015
    %v1017 = vrot.slane %v1016, 2
    %v1018 = vadd.f32 %v1016, %v1017
    %v1019 = vrot.slane %v1018, 1
    %v1020 = vadd.f32 %v1018, %v1019
    %v1021 = vsel %vm508, %v971, 0.0
    %v1022 = vrot.slane %v1021, 4
    %v1023 = vadd.f32 %v1021, %v1022
    %v1024 = vrot.slane %v1023, 2
    %v1025 = vadd.f32 %v1023, %v1024
    %v1026 = vrot.slane %v1025, 1
    %v1027 = vadd.f32 %v1025, %v1026
    %v1028 = vpack.c.bf16 %v978, %v978
    %v1029 = vpack.c.bf16 %v985, %v985
    %v1030 = vpack.c.bf16 %v992, %v992
    %v1031 = vpack.c.bf16 %v999, %v999
    %v1032 = vpack.c.bf16 %v1006, %v1006
    %v1033 = vpack.c.bf16 %v1013, %v1013
    %v1034 = vpack.c.bf16 %v1020, %v1020
    %v1035 = vpack.c.bf16 %v1027, %v1027
    %v1036 = vld [vmem:[%s10] sm:$0xf]
    %v1037 = vld [vmem:[%s10 + $0x4] sm:$0xf]
    %1046 = vrot.lane.b32.xlu0 %v500, 112
    %v1047 = vpop.permute.xlu0 %1046
    %1048 = vrot.lane.b32.xlu0 %v501, 112
    %v1049 = vpop.permute.xlu0 %1048
    %1050 = vrot.lane.b32.xlu0 %v502, 112
    %v1051 = vpop.permute.xlu0 %1050
    %1052 = vrot.lane.b32.xlu0 %v503, 112
    %v1053 = vpop.permute.xlu0 %1052
    %1054 = vrot.lane.b32.xlu0 %v504, 112
    %v1055 = vpop.permute.xlu0 %1054
    %1056 = vrot.lane.b32.xlu0 %v505, 112
    %v1057 = vpop.permute.xlu0 %1056
    %1058 = vrot.lane.b32.xlu0 %v506, 112
    %v1059 = vpop.permute.xlu0 %1058
    %1060 = vrot.lane.b32.xlu0 %v507, 112
    %v1061 = vpop.permute.xlu0 %1060
    %v1070 = vsel %vm508, %v1047, 0.0
    %1071 = vadd.xlane.f32.xlu0 %v1070
    %v1072 = vpop.xlane.xlu0 %1071
    %v1073 = vsel %vm508, %v1049, 0.0
    %1074 = vadd.xlane.f32.xlu0 %v1073
    %v1075 = vpop.xlane.xlu0 %1074
    %v1076 = vsel %vm508, %v1051, 0.0
    %1077 = vadd.xlane.f32.xlu0 %v1076
    %v1078 = vpop.xlane.xlu0 %1077
    %v1079 = vsel %vm508, %v1053, 0.0
    %1080 = vadd.xlane.f32.xlu0 %v1079
    %v1081 = vpop.xlane.xlu0 %1080
    %v1082 = vsel %vm508, %v1055, 0.0
    %1083 = vadd.xlane.f32.xlu0 %v1082
    %v1084 = vpop.xlane.xlu0 %1083
    %v1085 = vsel %vm508, %v1057, 0.0
    %1086 = vadd.xlane.f32.xlu0 %v1085
    %v1087 = vpop.xlane.xlu0 %1086
    %v1088 = vsel %vm508, %v1059, 0.0
    %1089 = vadd.xlane.f32.xlu0 %v1088
    %v1090 = vpop.xlane.xlu0 %1089
    %v1091 = vsel %vm508, %v1061, 0.0
    %1092 = vadd.xlane.f32.xlu0 %v1091
    %v1093 = vpop.xlane.xlu0 %1092
    %v1094 = vadd.f32 %v1072, %v540
    %v1095 = vadd.f32 %v1075, %v547
    %v1096 = vadd.f32 %v1078, %v554
    %v1097 = vadd.f32 %v1081, %v561
    %v1098 = vadd.f32 %v1084, %v568
    %v1099 = vadd.f32 %v1087, %v575
    %v1100 = vadd.f32 %v1090, %v582
    %v1101 = vadd.f32 %v1093, %v589
    %1110 = vset.pattern.permute.xlu0 0
    %1111 = vperm.xlu0 %1110, %v1094
    %v1112 = vpop.permute.xlu0 %1111
    %1113 = vset.pattern.permute.xlu0 0
    %1114 = vperm.xlu0 %1113, %v1095
    %v1115 = vpop.permute.xlu0 %1114
    %1116 = vset.pattern.permute.xlu0 0
    %1117 = vperm.xlu0 %1116, %v1096
    %v1118 = vpop.permute.xlu0 %1117
    %1119 = vset.pattern.permute.xlu0 0
    %1120 = vperm.xlu0 %1119, %v1097
    %v1121 = vpop.permute.xlu0 %1120
    %1122 = vset.pattern.permute.xlu0 0
    %1123 = vperm.xlu0 %1122, %v1098
    %v1124 = vpop.permute.xlu0 %1123
    %1125 = vset.pattern.permute.xlu0 0
    %1126 = vperm.xlu0 %1125, %v1099
    %v1127 = vpop.permute.xlu0 %1126
    %1128 = vset.pattern.permute.xlu0 0
    %1129 = vperm.xlu0 %1128, %v1100
    %v1130 = vpop.permute.xlu0 %1129
    %1131 = vset.pattern.permute.xlu0 0
    %1132 = vperm.xlu0 %1131, %v1101
    %v1133 = vpop.permute.xlu0 %1132
    %v1134 = vlaneseq
    %v1135 = vshrl.u32 %v1134, 7
    %v1136 = vsub.s32 %v639, %v1135
    %v1137 = vrot.slane %v1112, %v1136
    %v1138 = vlaneseq
    %v1139 = vshrl.u32 %v1138, 7
    %v1140 = vsub.s32 %v639, %v1139
    %v1141 = vrot.slane %v1115, %v1140
    %v1142 = vlaneseq
    %v1143 = vshrl.u32 %v1142, 7
    %v1144 = vsub.s32 %v639, %v1143
    %v1145 = vrot.slane %v1118, %v1144
    %v1146 = vlaneseq
    %v1147 = vshrl.u32 %v1146, 7
    %v1148 = vsub.s32 %v639, %v1147
    %v1149 = vrot.slane %v1121, %v1148
    %v1150 = vlaneseq
    %v1151 = vshrl.u32 %v1150, 7
    %v1152 = vsub.s32 %v639, %v1151
    %v1153 = vrot.slane %v1124, %v1152
    %v1154 = vlaneseq
    %v1155 = vshrl.u32 %v1154, 7
    %v1156 = vsub.s32 %v639, %v1155
    %v1157 = vrot.slane %v1127, %v1156
    %v1158 = vlaneseq
    %v1159 = vshrl.u32 %v1158, 7
    %v1160 = vsub.s32 %v639, %v1159
    %v1161 = vrot.slane %v1130, %v1160
    %v1162 = vlaneseq
    %v1163 = vshrl.u32 %v1162, 7
    %v1164 = vsub.s32 %v639, %v1163
    %v1165 = vrot.slane %v1133, %v1164
    %v1166 = vsel %vm672, %v1141, %v1137
    %v1167 = vsel %vm674, %v1145, %v1166
    %v1168 = vsel %vm676, %v1149, %v1167
    %v1169 = vsel %vm678, %v1153, %v1168
    %v1170 = vsel %vm680, %v1157, %v1169
    %v1171 = vsel %vm682, %v1161, %v1170
    %v1172 = vsel %vm684, %v1165, %v1171
    %v1174 = vsel %vm687, %v1172, -inf
    %1175 = vmax.xlane.f32.xlu0 %v1174
    %v1176 = vpop.xlane.xlu0 %1175
    %v1178 = vlaneseq
    %v1179 = vshrl.u32 %v1178, 7
    %v1180 = vsub.s32 0, %v1179
    %v1181 = vrot.slane %v1176, %v1180
    %v1182 = vlaneseq
    %v1183 = vshrl.u32 %v1182, 7
    %v1184 = vsub.s32 1, %v1183
    %v1185 = vrot.slane %v1176, %v1184
    %v1186 = vlaneseq
    %v1187 = vshrl.u32 %v1186, 7
    %v1188 = vsub.s32 2, %v1187
    %v1189 = vrot.slane %v1176, %v1188
    %v1190 = vlaneseq
    %v1191 = vshrl.u32 %v1190, 7
    %v1192 = vsub.s32 3, %v1191
    %v1193 = vrot.slane %v1176, %v1192
    %v1194 = vlaneseq
    %v1195 = vshrl.u32 %v1194, 7
    %v1196 = vsub.s32 4, %v1195
    %v1197 = vrot.slane %v1176, %v1196
    %v1198 = vlaneseq
    %v1199 = vshrl.u32 %v1198, 7
    %v1200 = vsub.s32 5, %v1199
    %v1201 = vrot.slane %v1176, %v1200
    %v1202 = vlaneseq
    %v1203 = vshrl.u32 %v1202, 7
    %v1204 = vsub.s32 6, %v1203
    %v1205 = vrot.slane %v1176, %v1204
    %v1206 = vlaneseq
    %v1207 = vshrl.u32 %v1206, 7
    %v1208 = vsub.s32 7, %v1207
    %v1209 = vrot.slane %v1176, %v1208
    %v1218 = vsub.f32 %v1094, %v1181
    %v1219 = vsub.f32 %v1095, %v1185
    %v1220 = vsub.f32 %v1096, %v1189
    %v1221 = vsub.f32 %v1097, %v1193
    %v1222 = vsub.f32 %v1098, %v1197
    %v1223 = vsub.f32 %v1099, %v1201
    %v1224 = vsub.f32 %v1100, %v1205
    %v1225 = vsub.f32 %v1101, %v1209
    %v1226 = vmul.f32 %v1218, 1.442695
    %v1227 = vpow.pop %v1226
    %v1228 = vmul.f32 %v1219, 1.442695
    %v1229 = vpow.pop %v1228
    %v1230 = vmul.f32 %v1220, 1.442695
    %v1231 = vpow.pop %v1230
    %v1232 = vmul.f32 %v1221, 1.442695
    %v1233 = vpow.pop %v1232
    %v1234 = vmul.f32 %v1222, 1.442695
    %v1235 = vpow.pop %v1234
    %v1236 = vmul.f32 %v1223, 1.442695
    %v1237 = vpow.pop %v1236
    %v1238 = vmul.f32 %v1224, 1.442695
    %v1239 = vpow.pop %v1238
    %v1240 = vmul.f32 %v1225, 1.442695
    %v1241 = vpow.pop %v1240
    %1250 = vset.pattern.permute.xlu0 0
    %1251 = vperm.xlu0 %1250, %v1227
    %v1252 = vpop.permute.xlu0 %1251
    %1253 = vset.pattern.permute.xlu0 0
    %1254 = vperm.xlu0 %1253, %v1229
    %v1255 = vpop.permute.xlu0 %1254
    %1256 = vset.pattern.permute.xlu0 0
    %1257 = vperm.xlu0 %1256, %v1231
    %v1258 = vpop.permute.xlu0 %1257
    %1259 = vset.pattern.permute.xlu0 0
    %1260 = vperm.xlu0 %1259, %v1233
    %v1261 = vpop.permute.xlu0 %1260
    %1262 = vset.pattern.permute.xlu0 0
    %1263 = vperm.xlu0 %1262, %v1235
    %v1264 = vpop.permute.xlu0 %1263
    %1265 = vset.pattern.permute.xlu0 0
    %1266 = vperm.xlu0 %1265, %v1237
    %v1267 = vpop.permute.xlu0 %1266
    %1268 = vset.pattern.permute.xlu0 0
    %1269 = vperm.xlu0 %1268, %v1239
    %v1270 = vpop.permute.xlu0 %1269
    %1271 = vset.pattern.permute.xlu0 0
    %1272 = vperm.xlu0 %1271, %v1241
    %v1273 = vpop.permute.xlu0 %1272
    %v1274 = vlaneseq
    %v1275 = vshrl.u32 %v1274, 7
    %v1276 = vsub.s32 %v639, %v1275
    %v1277 = vrot.slane %v1252, %v1276
    %v1278 = vlaneseq
    %v1279 = vshrl.u32 %v1278, 7
    %v1280 = vsub.s32 %v639, %v1279
    %v1281 = vrot.slane %v1255, %v1280
    %v1282 = vlaneseq
    %v1283 = vshrl.u32 %v1282, 7
    %v1284 = vsub.s32 %v639, %v1283
    %v1285 = vrot.slane %v1258, %v1284
    %v1286 = vlaneseq
    %v1287 = vshrl.u32 %v1286, 7
    %v1288 = vsub.s32 %v639, %v1287
    %v1289 = vrot.slane %v1261, %v1288
    %v1290 = vlaneseq
    %v1291 = vshrl.u32 %v1290, 7
    %v1292 = vsub.s32 %v639, %v1291
    %v1293 = vrot.slane %v1264, %v1292
    %v1294 = vlaneseq
    %v1295 = vshrl.u32 %v1294, 7
    %v1296 = vsub.s32 %v639, %v1295
    %v1297 = vrot.slane %v1267, %v1296
    %v1298 = vlaneseq
    %v1299 = vshrl.u32 %v1298, 7
    %v1300 = vsub.s32 %v639, %v1299
    %v1301 = vrot.slane %v1270, %v1300
    %v1302 = vlaneseq
    %v1303 = vshrl.u32 %v1302, 7
    %v1304 = vsub.s32 %v639, %v1303
    %v1305 = vrot.slane %v1273, %v1304
    %v1306 = vsel %vm672, %v1281, %v1277
    %v1307 = vsel %vm674, %v1285, %v1306
    %v1308 = vsel %vm676, %v1289, %v1307
    %v1309 = vsel %vm678, %v1293, %v1308
    %v1310 = vsel %vm680, %v1297, %v1309
    %v1311 = vsel %vm682, %v1301, %v1310
    %v1312 = vsel %vm684, %v1305, %v1311
    %v1314 = vsel %vm687, %v1312, 0.0
    %1315 = vadd.xlane.f32.xlu0 %v1314
    %v1316 = vpop.xlane.xlu0 %1315
    %v1317 = vrcp.pop %v1316
    %v1319 = vlaneseq
    %v1320 = vshrl.u32 %v1319, 7
    %v1321 = vsub.s32 0, %v1320
    %v1322 = vrot.slane %v1317, %v1321
    %v1323 = vlaneseq
    %v1324 = vshrl.u32 %v1323, 7
    %v1325 = vsub.s32 1, %v1324
    %v1326 = vrot.slane %v1317, %v1325
    %v1327 = vlaneseq
    %v1328 = vshrl.u32 %v1327, 7
    %v1329 = vsub.s32 2, %v1328
    %v1330 = vrot.slane %v1317, %v1329
    %v1331 = vlaneseq
    %v1332 = vshrl.u32 %v1331, 7
    %v1333 = vsub.s32 3, %v1332
    %v1334 = vrot.slane %v1317, %v1333
    %v1335 = vlaneseq
    %v1336 = vshrl.u32 %v1335, 7
    %v1337 = vsub.s32 4, %v1336
    %v1338 = vrot.slane %v1317, %v1337
    %v1339 = vlaneseq
    %v1340 = vshrl.u32 %v1339, 7
    %v1341 = vsub.s32 5, %v1340
    %v1342 = vrot.slane %v1317, %v1341
    %v1343 = vlaneseq
    %v1344 = vshrl.u32 %v1343, 7
    %v1345 = vsub.s32 6, %v1344
    %v1346 = vrot.slane %v1317, %v1345
    %v1347 = vlaneseq
    %v1348 = vshrl.u32 %v1347, 7
    %v1349 = vsub.s32 7, %v1348
    %v1350 = vrot.slane %v1317, %v1349
    %v1359 = vmul.f32 %v1227, %v1322
    %v1360 = vmul.f32 %v1229, %v1326
    %v1361 = vmul.f32 %v1231, %v1330
    %v1362 = vmul.f32 %v1233, %v1334
    %v1363 = vmul.f32 %v1235, %v1338
    %v1364 = vmul.f32 %v1237, %v1342
    %v1365 = vmul.f32 %v1239, %v1346
    %v1366 = vmul.f32 %v1241, %v1350
    %1375 = vset.pattern.permute.xlu0 0
    %1376 = vperm.xlu0 %1375, %v1359
    %v1377 = vpop.permute.xlu0 %1376
    %1378 = vset.pattern.permute.xlu0 0
    %1379 = vperm.xlu0 %1378, %v1360
    %v1380 = vpop.permute.xlu0 %1379
    %1381 = vset.pattern.permute.xlu0 0
    %1382 = vperm.xlu0 %1381, %v1361
    %v1383 = vpop.permute.xlu0 %1382
    %1384 = vset.pattern.permute.xlu0 0
    %1385 = vperm.xlu0 %1384, %v1362
    %v1386 = vpop.permute.xlu0 %1385
    %1387 = vset.pattern.permute.xlu0 0
    %1388 = vperm.xlu0 %1387, %v1363
    %v1389 = vpop.permute.xlu0 %1388
    %1390 = vset.pattern.permute.xlu0 0
    %1391 = vperm.xlu0 %1390, %v1364
    %v1392 = vpop.permute.xlu0 %1391
    %1393 = vset.pattern.permute.xlu0 0
    %1394 = vperm.xlu0 %1393, %v1365
    %v1395 = vpop.permute.xlu0 %1394
    %1396 = vset.pattern.permute.xlu0 0
    %1397 = vperm.xlu0 %1396, %v1366
    %v1398 = vpop.permute.xlu0 %1397
    %v1399 = vadd.s32 %v639, 4294967256
    %v1400 = vlaneseq
    %v1401 = vshrl.u32 %v1400, 7
    %v1402 = vsub.s32 %v1399, %v1401
    %v1403 = vrot.slane %v1377, %v1402
    %v1404 = vlaneseq
    %v1405 = vshrl.u32 %v1404, 7
    %v1406 = vsub.s32 %v1399, %v1405
    %v1407 = vrot.slane %v1380, %v1406
    %v1408 = vlaneseq
    %v1409 = vshrl.u32 %v1408, 7
    %v1410 = vsub.s32 %v1399, %v1409
    %v1411 = vrot.slane %v1383, %v1410
    %v1412 = vlaneseq
    %v1413 = vshrl.u32 %v1412, 7
    %v1414 = vsub.s32 %v1399, %v1413
    %v1415 = vrot.slane %v1386, %v1414
    %v1416 = vlaneseq
    %v1417 = vshrl.u32 %v1416, 7
    %v1418 = vsub.s32 %v1399, %v1417
    %v1419 = vrot.slane %v1389, %v1418
    %v1420 = vlaneseq
    %v1421 = vshrl.u32 %v1420, 7
    %v1422 = vsub.s32 %v1399, %v1421
    %v1423 = vrot.slane %v1392, %v1422
    %v1424 = vlaneseq
    %v1425 = vshrl.u32 %v1424, 7
    %v1426 = vsub.s32 %v1399, %v1425
    %v1427 = vrot.slane %v1395, %v1426
    %v1428 = vlaneseq
    %v1429 = vshrl.u32 %v1428, 7
    %v1430 = vsub.s32 %v1399, %v1429
    %v1431 = vrot.slane %v1398, %v1430
    %v1432 = vsel %vm672, %v1407, %v1403
    %v1433 = vsel %vm674, %v1411, %v1432
    %v1434 = vsel %vm676, %v1415, %v1433
    %v1435 = vsel %vm678, %v1419, %v1434
    %v1436 = vsel %vm680, %v1423, %v1435
    %v1437 = vsel %vm682, %v1427, %v1436
    %v1438 = vsel %vm684, %v1431, %v1437
    %vm1440 = vcmask 392512
    %1441 = vst.msk [vmem:[#allocation7] sm:$0xff] %vm1440, %v1438
    %v1450 = vmul.f32 %v1377, %v379
    %v1451 = vmul.f32 %v1380, %v382
    %v1452 = vmul.f32 %v1383, %v387
    %v1453 = vmul.f32 %v1386, %v390
    %v1454 = vmul.f32 %v1389, %v395
    %v1455 = vmul.f32 %v1392, %v398
    %v1456 = vmul.f32 %v1395, %v403
    %v1457 = vmul.f32 %v1398, %v406
    %vm1458 = vcmask 261248
    %v1459 = vsel %vm1458, %v1450, 0.0
    %v1460 = vrot.slane %v1459, 4
    %v1461 = vadd.f32 %v1459, %v1460
    %v1462 = vrot.slane %v1461, 2
    %v1463 = vadd.f32 %v1461, %v1462
    %v1464 = vrot.slane %v1463, 1
    %v1465 = vadd.f32 %v1463, %v1464
    %v1466 = vsel %vm1458, %v1451, 0.0
    %v1467 = vrot.slane %v1466, 4
    %v1468 = vadd.f32 %v1466, %v1467
    %v1469 = vrot.slane %v1468, 2
    %v1470 = vadd.f32 %v1468, %v1469
    %v1471 = vrot.slane %v1470, 1
    %v1472 = vadd.f32 %v1470, %v1471
    %v1473 = vsel %vm1458, %v1452, 0.0
    %v1474 = vrot.slane %v1473, 4
    %v1475 = vadd.f32 %v1473, %v1474
    %v1476 = vrot.slane %v1475, 2
    %v1477 = vadd.f32 %v1475, %v1476
    %v1478 = vrot.slane %v1477, 1
    %v1479 = vadd.f32 %v1477, %v1478
    %v1480 = vsel %vm1458, %v1453, 0.0
    %v1481 = vrot.slane %v1480, 4
    %v1482 = vadd.f32 %v1480, %v1481
    %v1483 = vrot.slane %v1482, 2
    %v1484 = vadd.f32 %v1482, %v1483
    %v1485 = vrot.slane %v1484, 1
    %v1486 = vadd.f32 %v1484, %v1485
    %v1487 = vsel %vm1458, %v1454, 0.0
    %v1488 = vrot.slane %v1487, 4
    %v1489 = vadd.f32 %v1487, %v1488
    %v1490 = vrot.slane %v1489, 2
    %v1491 = vadd.f32 %v1489, %v1490
    %v1492 = vrot.slane %v1491, 1
    %v1493 = vadd.f32 %v1491, %v1492
    %v1494 = vsel %vm1458, %v1455, 0.0
    %v1495 = vrot.slane %v1494, 4
    %v1496 = vadd.f32 %v1494, %v1495
    %v1497 = vrot.slane %v1496, 2
    %v1498 = vadd.f32 %v1496, %v1497
    %v1499 = vrot.slane %v1498, 1
    %v1500 = vadd.f32 %v1498, %v1499
    %v1501 = vsel %vm1458, %v1456, 0.0
    %v1502 = vrot.slane %v1501, 4
    %v1503 = vadd.f32 %v1501, %v1502
    %v1504 = vrot.slane %v1503, 2
    %v1505 = vadd.f32 %v1503, %v1504
    %v1506 = vrot.slane %v1505, 1
    %v1507 = vadd.f32 %v1505, %v1506
    %v1508 = vsel %vm1458, %v1457, 0.0
    %v1509 = vrot.slane %v1508, 4
    %v1510 = vadd.f32 %v1508, %v1509
    %v1511 = vrot.slane %v1510, 2
    %v1512 = vadd.f32 %v1510, %v1511
    %v1513 = vrot.slane %v1512, 1
    %v1514 = vadd.f32 %v1512, %v1513
    %v1515 = vpack.c.bf16 %v1465, %v1465
    %v1516 = vpack.c.bf16 %v1472, %v1472
    %v1517 = vpack.c.bf16 %v1479, %v1479
    %v1518 = vpack.c.bf16 %v1486, %v1486
    %v1519 = vpack.c.bf16 %v1493, %v1493
    %v1520 = vpack.c.bf16 %v1500, %v1500
    %v1521 = vpack.c.bf16 %v1507, %v1507
    %v1522 = vpack.c.bf16 %v1514, %v1514
    %v1523 = vld [vmem:[%s10 + $0x8] sm:$0xf]
    %v1524 = vld [vmem:[%s10 + $0xc] sm:$0xf]
    %v1533 = vunpack.c.l.b16 %v1515
    %v1534 = vunpack.c.l.b16 %v1516
    %v1535 = vunpack.c.l.b16 %v1517
    %v1536 = vunpack.c.l.b16 %v1518
    %v1537 = vunpack.c.l.b16 %v1519
    %v1538 = vunpack.c.l.b16 %v1520
    %v1539 = vunpack.c.l.b16 %v1521
    %v1540 = vunpack.c.l.b16 %v1522
    %v1541 = vsel %vm672, %v1534, %v1533
    %v1542 = vsel %vm674, %v1535, %v1541
    %v1543 = vsel %vm676, %v1536, %v1542
    %v1544 = vsel %vm678, %v1537, %v1543
    %v1545 = vsel %vm680, %v1538, %v1544
    %v1546 = vsel %vm682, %v1539, %v1545
    %v1547 = vsel %vm684, %v1540, %v1546
    %v1548 = vpack.c.b16 %v1547, %v1547
    %1549 = vrot.lane.b32.xlu0 %v1548, 112
    %v1550 = vpop.permute.xlu0 %1549
    %v1553 = vunpack.c.l.b16 %v1523
    %v1554 = vunpack.c.l.b16 %v1524
    %v1555 = vpack.c.b16 %v1554, %v1553
    %v1558 = vsel %vm508, %v1550, 0
    %1560 = vmatprep.subr.bf16.mxu0 0
    %1561 = vmatpush1.bf16.msra.mxu0 0
    %1562 = vmatprep.subr.bf16.mxu0 0
    %1563 = vmatpush1.bf16.msra.mxu0 0
    %1564 = vmatprep.subr.bf16.mxu0 0
    %1565 = vmatpush1.bf16.msra.mxu0 0
    %1566 = vmatprep.subr.bf16.mxu0 0
    %1567 = vmatpush1.bf16.msra.mxu0 0
    %1568 = vmatprep.subr.bf16.mxu0 0
    %1569 = vmatpush1.bf16.msra.mxu0 0
    %1570 = vmatprep.subr.bf16.mxu0 0
    %1571 = vmatpush1.bf16.msra.mxu0 0
    %1572 = vmatprep.subr.bf16.mxu0 0
    %1573 = vmatpush1.bf16.msra.mxu0 0
    %1574 = vmatprep.subr.bf16.mxu0 0
    %1575 = vmatpush1.bf16.msra.mxu0 %v1555
    %1576 = vmatprep.subr.bf16.mxu0 0
    %1577 = vmatpush2.bf16.msra.mxu0 0
    %1578 = vmatprep.subr.bf16.mxu0 0
    %1579 = vmatpush2.bf16.msra.mxu0 0
    %1580 = vmatprep.subr.bf16.mxu0 0
    %1581 = vmatpush2.bf16.msra.mxu0 0
    %1582 = vmatprep.subr.bf16.mxu0 0
    %1583 = vmatpush2.bf16.msra.mxu0 0
    %1584 = vmatprep.subr.bf16.mxu0 0
    %1585 = vmatpush2.bf16.msra.mxu0 0
    %1586 = vmatprep.subr.bf16.mxu0 0
    %1587 = vmatpush2.bf16.msra.mxu0 0
    %1588 = vmatprep.subr.bf16.mxu0 0
    %1589 = vmatpush2.bf16.msra.mxu0 0
    %1590 = vmatprep.subr.bf16.mxu0 0
    %1591 = vmatpush2.bf16.msra.mxu0 0
    %1592 = vmatprep.mubr.bf16.mxu0 0
    %1593 = vmatmul.mubr.bf16.gmra.mxu0 %v1558
    %v1594 = vpop.f32.mrf.mxu0
    %v1595 = vadd.f32 0.0, %v1594
    %v1596 = vpop.f32.mrf.mxu0
    %v1597 = vpop.f32.mrf.mxu0
    %v1598 = vpop.f32.mrf.mxu0
    %1599 = vdwg.mxu0
    %v1608 = vunpack.c.l.b16 %v1028
    %v1609 = vunpack.c.l.b16 %v1029
    %v1610 = vunpack.c.l.b16 %v1030
    %v1611 = vunpack.c.l.b16 %v1031
    %v1612 = vunpack.c.l.b16 %v1032
    %v1613 = vunpack.c.l.b16 %v1033
    %v1614 = vunpack.c.l.b16 %v1034
    %v1615 = vunpack.c.l.b16 %v1035
    %v1616 = vsel %vm672, %v1609, %v1608
    %v1617 = vsel %vm674, %v1610, %v1616
    %v1618 = vsel %vm676, %v1611, %v1617
    %v1619 = vsel %vm678, %v1612, %v1618
    %v1620 = vsel %vm680, %v1613, %v1619
    %v1621 = vsel %vm682, %v1614, %v1620
    %v1622 = vsel %vm684, %v1615, %v1621
    %v1623 = vpack.c.b16 %v1622, %v1622
    %v1626 = vunpack.c.l.b16 %v1036
    %v1627 = vunpack.c.l.b16 %v1037
    %v1628 = vpack.c.b16 %v1627, %v1626
    %v1631 = vsel %vm508, %v1623, 0
    %1633 = vmatprep.subr.bf16.mxu0 0
    %1634 = vmatpush1.bf16.msra.mxu0 0
    %1635 = vmatprep.subr.bf16.mxu0 0
    %1636 = vmatpush1.bf16.msra.mxu0 0
    %1637 = vmatprep.subr.bf16.mxu0 0
    %1638 = vmatpush1.bf16.msra.mxu0 0
    %1639 = vmatprep.subr.bf16.mxu0 0
    %1640 = vmatpush1.bf16.msra.mxu0 0
    %1641 = vmatprep.subr.bf16.mxu0 0
    %1642 = vmatpush1.bf16.msra.mxu0 0
    %1643 = vmatprep.subr.bf16.mxu0 0
    %1644 = vmatpush1.bf16.msra.mxu0 0
    %1645 = vmatprep.subr.bf16.mxu0 0
    %1646 = vmatpush1.bf16.msra.mxu0 0
    %1647 = vmatprep.subr.bf16.mxu0 0
    %1648 = vmatpush1.bf16.msra.mxu0 %v1628
    %1649 = vmatprep.subr.bf16.mxu0 0
    %1650 = vmatpush2.bf16.msra.mxu0 0
    %1651 = vmatprep.subr.bf16.mxu0 0
    %1652 = vmatpush2.bf16.msra.mxu0 0
    %1653 = vmatprep.subr.bf16.mxu0 0
    %1654 = vmatpush2.bf16.msra.mxu0 0
    %1655 = vmatprep.subr.bf16.mxu0 0
    %1656 = vmatpush2.bf16.msra.mxu0 0
    %1657 = vmatprep.subr.bf16.mxu0 0
    %1658 = vmatpush2.bf16.msra.mxu0 0
    %1659 = vmatprep.subr.bf16.mxu0 0
    %1660 = vmatpush2.bf16.msra.mxu0 0
    %1661 = vmatprep.subr.bf16.mxu0 0
    %1662 = vmatpush2.bf16.msra.mxu0 0
    %1663 = vmatprep.subr.bf16.mxu0 0
    %1664 = vmatpush2.bf16.msra.mxu0 0
    %1665 = vmatprep.mubr.bf16.mxu0 0
    %1666 = vmatmul.mubr.bf16.gmra.mxu0 %v1631
    %v1667 = vpop.f32.mrf.mxu0
    %v1668 = vadd.f32 %v1595, %v1667
    %v1669 = vpop.f32.mrf.mxu0
    %v1670 = vpop.f32.mrf.mxu0
    %v1671 = vpop.f32.mrf.mxu0
    %1672 = vdwg.mxu0
    %v1673 = vld [vmem:[%s11] sm:$0x1]
    %v1675 = vlaneseq
    %v1676 = vshrl.u32 %v1675, 7
    %v1677 = vsub.s32 0, %v1676
    %v1678 = vrot.slane %v1673, %v1677
    %v1680 = vadd.f32 %v1668, %v1678
    %1681 = vst.msk [vmem:[#allocation7] sm:$0xff] %vm79, %v1680
    // Predicated region
    $region58: #{tpu_custom_call.1} parent=1 // pred_check
      _
    $region59: #{tpu_custom_call.1} parent=1 // pred_check_branch
      %1683 = sbr.rel (0) target = $region61
    $region60: #{tpu_custom_call.1} parent=1 // pred_region
      %s1685 = ssub.s32 128, 128
      %1686 = vsyncadd [#allocation4], %s1685
      %s1688 = sshll.u32 [#allocation7], 4
      %s1689 = int_to_ptr.vmem [resolvable:$true] %s1688
      %1691 = dma.vmem_to_hbm [thread:$0]  %s1689, 128, %s12, [#allocation4]
    $region61: #{tpu_custom_call.1} parent=1 // pred_fallthru
      _
    // Predicated region
    $region62: #{tpu_custom_call.1} parent=1 // pred_check
      _
    $region63: #{tpu_custom_call.1} parent=1 // pred_check_branch
      %1693 = sbr.rel (0) target = $region65
    $region64: #{tpu_custom_call.1} parent=1 // pred_region
      %1694 = dma.done [#allocation4], 128
    $region65: #{tpu_custom_call.1} parent=1 // pred_fallthru
      _
    %1695 = vsyncpa [#allocation3], 1
    %1696 = vsyncpa [#allocation6], 1
    %1697 = vsyncpa [#allocation4], 1

</llo_original>
